<compile_context>
chip_gen: v7x
topology: tpu7x:2x2x1
jax: 0.10.0
libtpu: 0.0.40
codegen_flags: <defaults>
</compile_context>

<pallas_src>
import functools
import numpy as np
import jax
import jax.numpy as jnp
from jax.experimental import pallas as pl
from jax.experimental.pallas import tpu as pltpu

# ---------------- configuration (small, self-consistent shapes) ----------------
BATCH          = 2
C_TOTAL        = 3                      # 'residual' mode => 3 input channels
D_FEATURES     = 16
D_BLOCK        = 4
N_DEPTH        = 4                      # module asserts n_depth > 1
N_HEAD         = 2
N_CHANNEL      = 2
N_VCHANNEL     = 2
N_BLOCKS       = D_FEATURES // D_BLOCK
D_FEATURES_NEW = int(np.ceil(D_FEATURES / D_BLOCK) * D_BLOCK)    # == D_FEATURES here
SEQ            = N_DEPTH * N_BLOCKS                              # attention sequence length
DQ             = N_CHANNEL * D_BLOCK                             # query/key inner dim
DV             = N_VCHANNEL * D_BLOCK                            # value inner dim
N_J            = D_FEATURES_NEW // DV                            # DV-wide feature blocks
TEMPERATURE    = float(np.power(N_DEPTH, 0.5))
LN_EPS         = 1e-5

assert N_DEPTH > 1
assert D_FEATURES % D_BLOCK == 0
assert D_FEATURES_NEW % DV == 0 and N_J * DV == D_FEATURES_NEW


def feature_shuffle_index(d_features, depth):
    # TODO(synk): original feature_shuffle_index() was not provided; use a
    # deterministic circular-stride shuffle with the same output shape
    # [depth, d_features] and index range [0, d_features).
    f = np.arange(d_features)[None, :]
    d = np.arange(depth)[:, None]
    return ((f * depth + d) % d_features).astype(np.int32)


_SHUFFLE = feature_shuffle_index(D_FEATURES, N_DEPTH)            # (N_DEPTH, D_FEATURES)


# ------------- static index / indicator tables (built once at import) ----------
def _fm_seq_gather_indices():
    """Indices turning padded features [B, 3, F] directly into the per-head
    'sequence layout' [B, SEQ, C_TOTAL*D_BLOCK] in one XLA gather.  This replaces
    the old shuffle gather + three materialised to_heads() transposes."""
    ch = np.zeros((SEQ, C_TOTAL * D_BLOCK), np.int32)
    pos = np.zeros((SEQ, C_TOTAL * D_BLOCK), np.int32)
    for t in range(N_DEPTH):
        for nb in range(N_BLOCKS):
            s = t * N_BLOCKS + nb
            for c in range(C_TOTAL):
                for db in range(D_BLOCK):
                    ch[s, c * D_BLOCK + db] = c
                    pos[s, c * D_BLOCK + db] = _SHUFFLE[t, nb * D_BLOCK + db]
    return jnp.asarray(ch), jnp.asarray(pos)


CH_IDX, POS_IDX = _fm_seq_gather_indices()


def _conv2d_regroup_indicator():
    """IND[j, h, t, s, q] = 1 iff conv2d input channel r = h*N_VCHANNEL + q at
    (depth t, feature f in [j*DV, (j+1)*DV)) reads attention output o_h[s, f-j*DV]
    after the PyTorch view/permute regrouping of the attention output."""
    ind = np.zeros((N_J, N_HEAD, N_DEPTH, SEQ, N_VCHANNEL), np.float32)
    for h in range(N_HEAD):
        for q in range(N_VCHANNEL):
            for j in range(N_J):
                nb = (q * D_FEATURES_NEW + j * DV) // DV
                for t in range(N_DEPTH):
                    ind[j, h, t, t * N_BLOCKS + nb, q] = 1.0
    return jnp.asarray(ind)


CONV2D_IND = _conv2d_regroup_indicator()


def _expand_qkv_weight(w, ch):
    """(H*ch, C_TOTAL) 1x1 channel-mix weight -> (C_TOTAL*D_BLOCK, H*ch*D_BLOCK)
    block matrix so that fm_seq @ W yields q/k/v for ALL heads already in the
    [SEQ, d_block*ch] per-head layout (head h = lane slice h*ch*D_BLOCK ...)."""
    w4 = w.reshape(N_HEAD, ch, C_TOTAL)
    eye = jnp.eye(D_BLOCK, dtype=w.dtype)
    big = jnp.einsum("hcn,ij->nihjc", w4, eye)           # (Cin, DBi, H, DBj, ch)
    return big.reshape(C_TOTAL * D_BLOCK, N_HEAD * ch * D_BLOCK)


# -------------------------- fused Pallas kernel ---------------------------------
def _fused_kernel(fm_ref, res_ref, wq_ref, wk_ref, wv_ref, wsel_ref, w1_ref,
                  g_ref, b_ref, out_ref, attn_ref, *, temperature):
    x = fm_ref[0]                                        # (SEQ, C_TOTAL*D_BLOCK)
    inv_t = 1.0 / temperature

    # Q/K/V expansion for all heads: three MXU matmuls on lane-dense operands.
    q_all = jnp.dot(x, wq_ref[...], preferred_element_type=jnp.float32)   # (SEQ, H*DQ)
    k_all = jnp.dot(x, wk_ref[...], preferred_element_type=jnp.float32)   # (SEQ, H*DQ)
    v_all = jnp.dot(x, wv_ref[...], preferred_element_type=jnp.float32)   # (SEQ, H*DV)

    # conv2d(1x1) output accumulated in DV-wide feature blocks.
    y_blocks = [jnp.zeros((N_DEPTH, DV), jnp.float32) for _ in range(N_J)]

    for h in range(N_HEAD):                              # unrolled (N_HEAD is tiny, static)
        q_h = q_all[:, h * DQ:(h + 1) * DQ]              # (SEQ, DQ)
        k_h = k_all[:, h * DQ:(h + 1) * DQ]
        v_h = v_all[:, h * DV:(h + 1) * DV]

        # ScaledDotProduction (dropout = identity in eval mode)
        s = jax.lax.dot_general(q_h, k_h, (((1,), (1,)), ((), ())),
                                preferred_element_type=jnp.float32) * inv_t
        s = s - jnp.max(s, axis=-1, keepdims=True)
        p = jnp.exp(s)
        p = p * pl.reciprocal(jnp.sum(p, axis=-1, keepdims=True), approx=True)
        attn_ref[h, 0] = p                               # (SEQ, SEQ)

        o_h = jnp.dot(p, v_h, preferred_element_type=jnp.float32)          # (SEQ, DV)

        # Conv2d(H*Cv -> 1, 1x1) fused with the PyTorch view/permute regrouping:
        # y[:, j*DV:(j+1)*DV] += Wsel[j, h] @ o_h
        for j in range(N_J):
            y_blocks[j] = y_blocks[j] + jnp.dot(
                wsel_ref[j, h], o_h, preferred_element_type=jnp.float32)    # (T, DV)

    y = jnp.concatenate(y_blocks, axis=-1)               # (N_DEPTH, D_FEATURES_NEW)

    # pooling / conv1d over depth
    avg_p = jnp.mean(y, axis=0, keepdims=True)           # AvgPool2d((n_depth, 1))
    max_p = jnp.max(y, axis=0, keepdims=True)            # MaxPool2d((n_depth, 1))
    conv = jnp.dot(w1_ref[...], y, preferred_element_type=jnp.float32)      # Conv1d(T->1, k=1)

    # residual mode: cat([conv, avg, max]) (+dropout=identity) + residual, LayerNorm
    z = jnp.concatenate([conv, avg_p, max_p], axis=0) + res_ref[0]          # (3, F_new)
    mu = jnp.mean(z, axis=-1, keepdims=True)
    var = jnp.mean((z - mu) ** 2, axis=-1, keepdims=True)
    out_ref[0] = (z - mu) * jax.lax.rsqrt(var + LN_EPS) * g_ref[...] + b_ref[...]


# -------------------------- parameters ------------------------------------------
def init_params(key):
    ks = jax.random.split(key, 5)

    def xavier(k, shape, fan_in, fan_out):
        std = float(np.sqrt(2.0 / (fan_in + fan_out)))
        return std * jax.random.normal(k, shape, dtype=jnp.float32)

    return dict(
        # TODO(synk): original `expansion_layer` factory was not provided; model it
        # as a 1x1 channel-mix over the c_total axis, xavier-normal init.
        wq=xavier(ks[0], (N_HEAD * N_CHANNEL, C_TOTAL), C_TOTAL, N_HEAD * N_CHANNEL),
        wk=xavier(ks[1], (N_HEAD * N_CHANNEL, C_TOTAL), C_TOTAL, N_HEAD * N_CHANNEL),
        wv=xavier(ks[2], (N_HEAD * N_VCHANNEL, C_TOTAL), C_TOTAL, N_HEAD * N_VCHANNEL),
        conv2d_w=xavier(ks[3], (N_HEAD * N_VCHANNEL,), N_HEAD * N_VCHANNEL, 1),
        conv1d_w=xavier(ks[4], (1, N_DEPTH), N_DEPTH, 1),     # lane-major
        ln_gamma=jnp.ones((1, D_FEATURES_NEW), jnp.float32),
        ln_beta=jnp.zeros((1, D_FEATURES_NEW), jnp.float32),
    )


# -------------------------- full forward -----------------------------------------
def shuffle_self_attention_layer_v2(features, params):
    B = features.shape[0]
    pad = D_FEATURES_NEW - D_FEATURES
    features = jnp.pad(features, ((0, 0), (0, 0), (0, pad)))          # F.pad(..., value=0)
    residual = features                                               # [B, 3, F_new]

    # shuffle + per-head sequence layout in ONE small gather (no transposed copies)
    fm_seq = features[:, CH_IDX, POS_IDX]                             # [B, SEQ, C_TOTAL*D_BLOCK]

    # parameter-only transforms (done once per trace, negligible):
    wq_big = _expand_qkv_weight(params["wq"], N_CHANNEL)              # (C*DB, H*DQ)
    wk_big = _expand_qkv_weight(params["wk"], N_CHANNEL)
    wv_big = _expand_qkv_weight(params["wv"], N_VCHANNEL)
    wsel = jnp.einsum("jhtsq,hq->jhts", CONV2D_IND,
                      params["conv2d_w"].reshape(N_HEAD, N_VCHANNEL)) # (N_J, H, T, SEQ)

    out, attn = pl.pallas_call(
        functools.partial(_fused_kernel, temperature=TEMPERATURE),
        out_shape=(jax.ShapeDtypeStruct((B, 3, D_FEATURES_NEW), jnp.float32),
                   jax.ShapeDtypeStruct((N_HEAD, B, SEQ, SEQ), jnp.float32)),
        grid=(B,),
        in_specs=[
            pl.BlockSpec((1, SEQ, C_TOTAL * D_BLOCK), lambda b: (b, 0, 0)),
            pl.BlockSpec((1, 3, D_FEATURES_NEW), lambda b: (b, 0, 0)),
            pl.BlockSpec((C_TOTAL * D_BLOCK, N_HEAD * DQ), lambda b: (0, 0)),
            pl.BlockSpec((C_TOTAL * D_BLOCK, N_HEAD * DQ), lambda b: (0, 0)),
            pl.BlockSpec((C_TOTAL * D_BLOCK, N_HEAD * DV), lambda b: (0, 0)),
            pl.BlockSpec((N_J, N_HEAD, N_DEPTH, SEQ), lambda b: (0, 0, 0, 0)),
            pl.BlockSpec((1, N_DEPTH), lambda b: (0, 0)),
            pl.BlockSpec((1, D_FEATURES_NEW), lambda b: (0, 0)),
            pl.BlockSpec((1, D_FEATURES_NEW), lambda b: (0, 0)),
        ],
        out_specs=(pl.BlockSpec((1, 3, D_FEATURES_NEW), lambda b: (b, 0, 0)),
                   pl.BlockSpec((N_HEAD, 1, SEQ, SEQ), lambda b: (0, b, 0, 0))),
        compiler_params=pltpu.CompilerParams(dimension_semantics=("parallel",)),
    )(fm_seq, residual, wq_big, wk_big, wv_big, wsel,
      params["conv1d_w"], params["ln_gamma"], params["ln_beta"])

    # PyTorch returns attn as [n_head * batch, SEQ, SEQ], head-major.
    attn = attn.reshape(N_HEAD * B, SEQ, SEQ)

    # TODO(synk): ShuffleBottleneckLayerV2 was not provided; running use_bottleneck=False.
    return out, attn


if __name__ == "__main__":
    key = jax.random.PRNGKey(0)
    pkey, xkey = jax.random.split(key)
    params = init_params(pkey)
    features = jax.random.normal(xkey, (BATCH, C_TOTAL, D_FEATURES), dtype=jnp.float32)

    fwd = jax.jit(shuffle_self_attention_layer_v2)
    output, attn = fwd(features, params)
    jax.block_until_ready((output, attn))

    assert output.shape == (BATCH, 3, D_FEATURES_NEW)
    assert attn.shape == (N_HEAD * BATCH, SEQ, SEQ)
    assert bool(jnp.all(jnp.isfinite(output))) and bool(jnp.all(jnp.isfinite(attn)))
    print("KERNEL_OK")
</pallas_src>

<mosaic_0001>
module attributes {stable_mosaic.version = 11 : i64} {
  func.func @_fused_kernel(%arg0: i32, %arg1: memref<1x16x12xf32, #tpu.memory_space<vmem>>, %arg2: memref<1x3x16xf32, #tpu.memory_space<vmem>>, %arg3: memref<12x16xf32, #tpu.memory_space<vmem>>, %arg4: memref<12x16xf32, #tpu.memory_space<vmem>>, %arg5: memref<12x16xf32, #tpu.memory_space<vmem>>, %arg6: memref<2x2x4x16xf32, #tpu.memory_space<vmem>>, %arg7: memref<1x4xf32, #tpu.memory_space<vmem>>, %arg8: memref<1x16xf32, #tpu.memory_space<vmem>>, %arg9: memref<1x16xf32, #tpu.memory_space<vmem>>, %arg10: memref<1x3x16xf32, #tpu.memory_space<vmem>>, %arg11: memref<2x1x16x16xf32, #tpu.memory_space<vmem>>) attributes {dimension_semantics = [#tpu.dimension_semantics<parallel>], iteration_bounds = array<i64: 2>, scalar_prefetch = 0 : i64, scratch_operands = 0 : i64, tpu.core_type = #tpu.core_type<tc>, window_params = [{transform_indices = @transform_0, window_bounds = array<i64: 1, 16, 12>}, {transform_indices = @transform_1, window_bounds = array<i64: 1, 3, 16>}, {pipeline_mode = #tpu.pipeline_mode<synchronous>, transform_indices = @transform_2, window_bounds = array<i64: 12, 16>}, {pipeline_mode = #tpu.pipeline_mode<synchronous>, transform_indices = @transform_3, window_bounds = array<i64: 12, 16>}, {pipeline_mode = #tpu.pipeline_mode<synchronous>, transform_indices = @transform_4, window_bounds = array<i64: 12, 16>}, {pipeline_mode = #tpu.pipeline_mode<synchronous>, transform_indices = @transform_5, window_bounds = array<i64: 2, 2, 4, 16>}, {pipeline_mode = #tpu.pipeline_mode<synchronous>, transform_indices = @transform_6, window_bounds = array<i64: 1, 4>}, {pipeline_mode = #tpu.pipeline_mode<synchronous>, transform_indices = @transform_7, window_bounds = array<i64: 1, 16>}, {pipeline_mode = #tpu.pipeline_mode<synchronous>, transform_indices = @transform_8, window_bounds = array<i64: 1, 16>}, {transform_indices = @transform_9, window_bounds = array<i64: 1, 3, 16>}, {transform_indices = @transform_10, window_bounds = array<i64: 2, 1, 16, 16>}]} {
    %c0 = arith.constant 0 : index
    %c0_0 = arith.constant 0 : index
    %c0_1 = arith.constant 0 : index
    %0 = vector.load %arg1[%c0, %c0_0, %c0_1] : memref<1x16x12xf32, #tpu.memory_space<vmem>>, vector<1x16x12xf32>
    %1 = vector.shape_cast %0 : vector<1x16x12xf32> to vector<16x12xf32>
    %c0_2 = arith.constant 0 : index
    %c0_3 = arith.constant 0 : index
    %2 = vector.load %arg3[%c0_2, %c0_3] : memref<12x16xf32, #tpu.memory_space<vmem>>, vector<12x16xf32>
    %cst = arith.constant dense<0.000000e+00> : vector<16x16xf32>
    %3 = tpu.matmul %1, %2, %cst {dimension_numbers = #tpu.dot_dimension_numbers<[1], [0], [0], [1], [0, 0, 1, 1], [], []>} : vector<16x12xf32>, vector<12x16xf32>, vector<16x16xf32> -> vector<16x16xf32>
    %c0_4 = arith.constant 0 : index
    %c0_5 = arith.constant 0 : index
    %4 = vector.load %arg4[%c0_4, %c0_5] : memref<12x16xf32, #tpu.memory_space<vmem>>, vector<12x16xf32>
    %cst_6 = arith.constant dense<0.000000e+00> : vector<16x16xf32>
    %5 = tpu.matmul %1, %4, %cst_6 {dimension_numbers = #tpu.dot_dimension_numbers<[1], [0], [0], [1], [0, 0, 1, 1], [], []>} : vector<16x12xf32>, vector<12x16xf32>, vector<16x16xf32> -> vector<16x16xf32>
    %c0_7 = arith.constant 0 : index
    %c0_8 = arith.constant 0 : index
    %6 = vector.load %arg5[%c0_7, %c0_8] : memref<12x16xf32, #tpu.memory_space<vmem>>, vector<12x16xf32>
    %cst_9 = arith.constant dense<0.000000e+00> : vector<16x16xf32>
    %7 = tpu.matmul %1, %6, %cst_9 {dimension_numbers = #tpu.dot_dimension_numbers<[1], [0], [0], [1], [0, 0, 1, 1], [], []>} : vector<16x12xf32>, vector<12x16xf32>, vector<16x16xf32> -> vector<16x16xf32>
    %cst_10 = arith.constant 0.000000e+00 : f32
    %8 = vector.broadcast %cst_10 : f32 to vector<4x8xf32>
    %cst_11 = arith.constant 0.000000e+00 : f32
    %9 = vector.broadcast %cst_11 : f32 to vector<4x8xf32>
    %10 = vector.extract_strided_slice %3 {offsets = [0, 0], sizes = [16, 8], strides = [1, 1]} : vector<16x16xf32> to vector<16x8xf32>
    %11 = vector.extract_strided_slice %5 {offsets = [0, 0], sizes = [16, 8], strides = [1, 1]} : vector<16x16xf32> to vector<16x8xf32>
    %12 = vector.extract_strided_slice %7 {offsets = [0, 0], sizes = [16, 8], strides = [1, 1]} : vector<16x16xf32> to vector<16x8xf32>
    %cst_12 = arith.constant dense<0.000000e+00> : vector<16x16xf32>
    %13 = tpu.matmul %10, %11, %cst_12 {dimension_numbers = #tpu.dot_dimension_numbers<[1], [1], [0], [0], [0, 0, 1, 0], [], []>} : vector<16x8xf32>, vector<16x8xf32>, vector<16x16xf32> -> vector<16x16xf32>
    %cst_13 = arith.constant 5.000000e-01 : f32
    %14 = vector.broadcast %cst_13 : f32 to vector<16x16xf32>
    %15 = arith.mulf %13, %14 : vector<16x16xf32>
    %cst_14 = arith.constant dense<0xFF800000> : vector<16xf32>
    %16 = vector.multi_reduction <maximumf>, %15, %cst_14 [1] : vector<16x16xf32> to vector<16xf32>
    %17 = vector.shape_cast %16 : vector<16xf32> to vector<16x1xf32>
    %18 = vector.broadcast %17 : vector<16x1xf32> to vector<16x16xf32>
    %19 = arith.subf %15, %18 : vector<16x16xf32>
    %20 = math.exp %19 : vector<16x16xf32>
    %cst_15 = arith.constant dense<0.000000e+00> : vector<16xf32>
    %21 = vector.multi_reduction <add>, %20, %cst_15 [1] : vector<16x16xf32> to vector<16xf32>
    %22 = vector.shape_cast %21 : vector<16xf32> to vector<16x1xf32>
    %23 = tpu.reciprocal %22 {approx = true} : vector<16x1xf32> -> vector<16x1xf32>
    %24 = vector.broadcast %23 : vector<16x1xf32> to vector<16x16xf32>
    %25 = arith.mulf %20, %24 : vector<16x16xf32>
    %c0_16 = arith.constant 0 : index
    %c0_17 = arith.constant 0 : index
    %c0_18 = arith.constant 0 : index
    %c0_19 = arith.constant 0 : index
    %26 = vector.load %arg11[%c0_16, %c0_17, %c0_18, %c0_19] : memref<2x1x16x16xf32, #tpu.memory_space<vmem>>, vector<1x1x16x16xf32>
    %27 = vector.shape_cast %26 : vector<1x1x16x16xf32> to vector<16x16xf32>
    %28 = vector.shape_cast %25 : vector<16x16xf32> to vector<1x1x16x16xf32>
    tpu.vector_store %arg11[%c0_16, %c0_17, %c0_18, %c0_19], %28 {strides = array<i32>} : memref<2x1x16x16xf32, #tpu.memory_space<vmem>>, vector<1x1x16x16xf32>,
    %cst_20 = arith.constant dense<0.000000e+00> : vector<16x8xf32>
    %29 = tpu.matmul %25, %12, %cst_20 {dimension_numbers = #tpu.dot_dimension_numbers<[1], [0], [0], [1], [0, 0, 1, 1], [], []>} : vector<16x16xf32>, vector<16x8xf32>, vector<16x8xf32> -> vector<16x8xf32>
    %c0_21 = arith.constant 0 : index
    %c0_22 = arith.constant 0 : index
    %c0_23 = arith.constant 0 : index
    %c0_24 = arith.constant 0 : index
    %30 = vector.load %arg6[%c0_21, %c0_22, %c0_23, %c0_24] : memref<2x2x4x16xf32, #tpu.memory_space<vmem>>, vector<1x1x4x16xf32>
    %31 = vector.shape_cast %30 : vector<1x1x4x16xf32> to vector<4x16xf32>
    %cst_25 = arith.constant dense<0.000000e+00> : vector<4x8xf32>
    %32 = tpu.matmul %31, %29, %cst_25 {dimension_numbers = #tpu.dot_dimension_numbers<[1], [0], [0], [1], [0, 0, 1, 1], [], []>} : vector<4x16xf32>, vector<16x8xf32>, vector<4x8xf32> -> vector<4x8xf32>
    %33 = arith.addf %8, %32 : vector<4x8xf32>
    %c1 = arith.constant 1 : index
    %c0_26 = arith.constant 0 : index
    %c0_27 = arith.constant 0 : index
    %c0_28 = arith.constant 0 : index
    %34 = vector.load %arg6[%c1, %c0_26, %c0_27, %c0_28] : memref<2x2x4x16xf32, #tpu.memory_space<vmem>>, vector<1x1x4x16xf32>
    %35 = vector.shape_cast %34 : vector<1x1x4x16xf32> to vector<4x16xf32>
    %cst_29 = arith.constant dense<0.000000e+00> : vector<4x8xf32>
    %36 = tpu.matmul %35, %29, %cst_29 {dimension_numbers = #tpu.dot_dimension_numbers<[1], [0], [0], [1], [0, 0, 1, 1], [], []>} : vector<4x16xf32>, vector<16x8xf32>, vector<4x8xf32> -> vector<4x8xf32>
    %37 = arith.addf %9, %36 : vector<4x8xf32>
    %38 = vector.extract_strided_slice %3 {offsets = [0, 8], sizes = [16, 8], strides = [1, 1]} : vector<16x16xf32> to vector<16x8xf32>
    %39 = vector.extract_strided_slice %5 {offsets = [0, 8], sizes = [16, 8], strides = [1, 1]} : vector<16x16xf32> to vector<16x8xf32>
    %40 = vector.extract_strided_slice %7 {offsets = [0, 8], sizes = [16, 8], strides = [1, 1]} : vector<16x16xf32> to vector<16x8xf32>
    %cst_30 = arith.constant dense<0.000000e+00> : vector<16x16xf32>
    %41 = tpu.matmul %38, %39, %cst_30 {dimension_numbers = #tpu.dot_dimension_numbers<[1], [1], [0], [0], [0, 0, 1, 0], [], []>} : vector<16x8xf32>, vector<16x8xf32>, vector<16x16xf32> -> vector<16x16xf32>
    %cst_31 = arith.constant 5.000000e-01 : f32
    %42 = vector.broadcast %cst_31 : f32 to vector<16x16xf32>
    %43 = arith.mulf %41, %42 : vector<16x16xf32>
    %cst_32 = arith.constant dense<0xFF800000> : vector<16xf32>
    %44 = vector.multi_reduction <maximumf>, %43, %cst_32 [1] : vector<16x16xf32> to vector<16xf32>
    %45 = vector.shape_cast %44 : vector<16xf32> to vector<16x1xf32>
    %46 = vector.broadcast %45 : vector<16x1xf32> to vector<16x16xf32>
    %47 = arith.subf %43, %46 : vector<16x16xf32>
    %48 = math.exp %47 : vector<16x16xf32>
    %cst_33 = arith.constant dense<0.000000e+00> : vector<16xf32>
    %49 = vector.multi_reduction <add>, %48, %cst_33 [1] : vector<16x16xf32> to vector<16xf32>
    %50 = vector.shape_cast %49 : vector<16xf32> to vector<16x1xf32>
    %51 = tpu.reciprocal %50 {approx = true} : vector<16x1xf32> -> vector<16x1xf32>
    %52 = vector.broadcast %51 : vector<16x1xf32> to vector<16x16xf32>
    %53 = arith.mulf %48, %52 : vector<16x16xf32>
    %c1_34 = arith.constant 1 : index
    %c0_35 = arith.constant 0 : index
    %c0_36 = arith.constant 0 : index
    %c0_37 = arith.constant 0 : index
    %54 = vector.load %arg11[%c1_34, %c0_35, %c0_36, %c0_37] : memref<2x1x16x16xf32, #tpu.memory_space<vmem>>, vector<1x1x16x16xf32>
    %55 = vector.shape_cast %54 : vector<1x1x16x16xf32> to vector<16x16xf32>
    %56 = vector.shape_cast %53 : vector<16x16xf32> to vector<1x1x16x16xf32>
    tpu.vector_store %arg11[%c1_34, %c0_35, %c0_36, %c0_37], %56 {strides = array<i32>} : memref<2x1x16x16xf32, #tpu.memory_space<vmem>>, vector<1x1x16x16xf32>,
    %cst_38 = arith.constant dense<0.000000e+00> : vector<16x8xf32>
    %57 = tpu.matmul %53, %40, %cst_38 {dimension_numbers = #tpu.dot_dimension_numbers<[1], [0], [0], [1], [0, 0, 1, 1], [], []>} : vector<16x16xf32>, vector<16x8xf32>, vector<16x8xf32> -> vector<16x8xf32>
    %c0_39 = arith.constant 0 : index
    %c1_40 = arith.constant 1 : index
    %c0_41 = arith.constant 0 : index
    %c0_42 = arith.constant 0 : index
    %58 = vector.load %arg6[%c0_39, %c1_40, %c0_41, %c0_42] : memref<2x2x4x16xf32, #tpu.memory_space<vmem>>, vector<1x1x4x16xf32>
    %59 = vector.shape_cast %58 : vector<1x1x4x16xf32> to vector<4x16xf32>
    %cst_43 = arith.constant dense<0.000000e+00> : vector<4x8xf32>
    %60 = tpu.matmul %59, %57, %cst_43 {dimension_numbers = #tpu.dot_dimension_numbers<[1], [0], [0], [1], [0, 0, 1, 1], [], []>} : vector<4x16xf32>, vector<16x8xf32>, vector<4x8xf32> -> vector<4x8xf32>
    %61 = arith.addf %33, %60 : vector<4x8xf32>
    %c1_44 = arith.constant 1 : index
    %c1_45 = arith.constant 1 : index
    %c0_46 = arith.constant 0 : index
    %c0_47 = arith.constant 0 : index
    %62 = vector.load %arg6[%c1_44, %c1_45, %c0_46, %c0_47] : memref<2x2x4x16xf32, #tpu.memory_space<vmem>>, vector<1x1x4x16xf32>
    %63 = vector.shape_cast %62 : vector<1x1x4x16xf32> to vector<4x16xf32>
    %cst_48 = arith.constant dense<0.000000e+00> : vector<4x8xf32>
    %64 = tpu.matmul %63, %57, %cst_48 {dimension_numbers = #tpu.dot_dimension_numbers<[1], [0], [0], [1], [0, 0, 1, 1], [], []>} : vector<4x16xf32>, vector<16x8xf32>, vector<4x8xf32> -> vector<4x8xf32>
    %65 = arith.addf %37, %64 : vector<4x8xf32>
    %66 = tpu.concatenate %61, %65 in 1 : vector<4x8xf32>, vector<4x8xf32> -> vector<4x16xf32>
    %cst_49 = arith.constant dense<0.000000e+00> : vector<16xf32>
    %67 = vector.multi_reduction <add>, %66, %cst_49 [0] : vector<4x16xf32> to vector<16xf32>
    %68 = vector.shape_cast %67 : vector<16xf32> to vector<1x16xf32>
    %cst_50 = arith.constant 4.000000e+00 : f32
    %69 = vector.broadcast %cst_50 : f32 to vector<1x16xf32>
    %70 = arith.divf %68, %69 : vector<1x16xf32>
    %cst_51 = arith.constant dense<0xFF800000> : vector<16xf32>
    %71 = vector.multi_reduction <maximumf>, %66, %cst_51 [0] : vector<4x16xf32> to vector<16xf32>
    %72 = vector.shape_cast %71 : vector<16xf32> to vector<1x16xf32>
    %c0_52 = arith.constant 0 : index
    %c0_53 = arith.constant 0 : index
    %73 = vector.load %arg7[%c0_52, %c0_53] : memref<1x4xf32, #tpu.memory_space<vmem>>, vector<1x4xf32>
    %cst_54 = arith.constant dense<0.000000e+00> : vector<1x16xf32>
    %74 = tpu.matmul %73, %66, %cst_54 {dimension_numbers = #tpu.dot_dimension_numbers<[1], [0], [0], [1], [0, 0, 1, 1], [], []>} : vector<1x4xf32>, vector<4x16xf32>, vector<1x16xf32> -> vector<1x16xf32>
    %75 = tpu.concatenate %74, %70, %72 in 0 : vector<1x16xf32>, vector<1x16xf32>, vector<1x16xf32> -> vector<3x16xf32>
    %c0_55 = arith.constant 0 : index
    %c0_56 = arith.constant 0 : index
    %c0_57 = arith.constant 0 : index
    %76 = vector.load %arg2[%c0_55, %c0_56, %c0_57] : memref<1x3x16xf32, #tpu.memory_space<vmem>>, vector<1x3x16xf32>
    %77 = vector.shape_cast %76 : vector<1x3x16xf32> to vector<3x16xf32>
    %78 = arith.addf %75, %77 : vector<3x16xf32>
    %cst_58 = arith.constant dense<0.000000e+00> : vector<3xf32>
    %79 = vector.multi_reduction <add>, %78, %cst_58 [1] : vector<3x16xf32> to vector<3xf32>
    %80 = vector.shape_cast %79 : vector<3xf32> to vector<3x1xf32>
    %cst_59 = arith.constant 1.600000e+01 : f32
    %81 = vector.broadcast %cst_59 : f32 to vector<3x1xf32>
    %82 = arith.divf %80, %81 : vector<3x1xf32>
    %83 = vector.broadcast %82 : vector<3x1xf32> to vector<3x16xf32>
    %84 = arith.subf %78, %83 : vector<3x16xf32>
    %85 = arith.mulf %84, %84 : vector<3x16xf32>
    %cst_60 = arith.constant dense<0.000000e+00> : vector<3xf32>
    %86 = vector.multi_reduction <add>, %85, %cst_60 [1] : vector<3x16xf32> to vector<3xf32>
    %87 = vector.shape_cast %86 : vector<3xf32> to vector<3x1xf32>
    %cst_61 = arith.constant 1.600000e+01 : f32
    %88 = vector.broadcast %cst_61 : f32 to vector<3x1xf32>
    %89 = arith.divf %87, %88 : vector<3x1xf32>
    %90 = vector.broadcast %82 : vector<3x1xf32> to vector<3x16xf32>
    %91 = arith.subf %78, %90 : vector<3x16xf32>
    %cst_62 = arith.constant 9.99999974E-6 : f32
    %92 = vector.broadcast %cst_62 : f32 to vector<3x1xf32>
    %93 = arith.addf %89, %92 : vector<3x1xf32>
    %94 = math.rsqrt %93 : vector<3x1xf32>
    %95 = vector.broadcast %94 : vector<3x1xf32> to vector<3x16xf32>
    %96 = arith.mulf %91, %95 : vector<3x16xf32>
    %c0_63 = arith.constant 0 : index
    %c0_64 = arith.constant 0 : index
    %97 = vector.load %arg8[%c0_63, %c0_64] : memref<1x16xf32, #tpu.memory_space<vmem>>, vector<1x16xf32>
    %98 = vector.broadcast %97 : vector<1x16xf32> to vector<3x16xf32>
    %99 = arith.mulf %96, %98 : vector<3x16xf32>
    %c0_65 = arith.constant 0 : index
    %c0_66 = arith.constant 0 : index
    %100 = vector.load %arg9[%c0_65, %c0_66] : memref<1x16xf32, #tpu.memory_space<vmem>>, vector<1x16xf32>
    %101 = vector.broadcast %100 : vector<1x16xf32> to vector<3x16xf32>
    %102 = arith.addf %99, %101 : vector<3x16xf32>
    %c0_67 = arith.constant 0 : index
    %c0_68 = arith.constant 0 : index
    %c0_69 = arith.constant 0 : index
    %103 = vector.load %arg10[%c0_67, %c0_68, %c0_69] : memref<1x3x16xf32, #tpu.memory_space<vmem>>, vector<1x3x16xf32>
    %104 = vector.shape_cast %103 : vector<1x3x16xf32> to vector<3x16xf32>
    %105 = vector.shape_cast %102 : vector<3x16xf32> to vector<1x3x16xf32>
    tpu.vector_store %arg10[%c0_67, %c0_68, %c0_69], %105 {strides = array<i32>} : memref<1x3x16xf32, #tpu.memory_space<vmem>>, vector<1x3x16xf32>,
    return
  }
  func.func @transform_0(%arg0: i32) -> (i32, i32, i32) {
    %c0_i32 = arith.constant 0 : i32
    %c0_i32_0 = arith.constant 0 : i32
    %c0_i32_1 = arith.constant 0 : i32
    return %arg0, %c0_i32, %c0_i32_0 : i32, i32, i32
  }
  func.func @transform_1(%arg0: i32) -> (i32, i32, i32) {
    %c0_i32 = arith.constant 0 : i32
    %c0_i32_0 = arith.constant 0 : i32
    %c0_i32_1 = arith.constant 0 : i32
    return %arg0, %c0_i32, %c0_i32_0 : i32, i32, i32
  }
  func.func @transform_2(%arg0: i32) -> (i32, i32) {
    %c0_i32 = arith.constant 0 : i32
    %c0_i32_0 = arith.constant 0 : i32
    %c0_i32_1 = arith.constant 0 : i32
    return %c0_i32, %c0_i32_0 : i32, i32
  }
  func.func @transform_3(%arg0: i32) -> (i32, i32) {
    %c0_i32 = arith.constant 0 : i32
    %c0_i32_0 = arith.constant 0 : i32
    %c0_i32_1 = arith.constant 0 : i32
    return %c0_i32, %c0_i32_0 : i32, i32
  }
  func.func @transform_4(%arg0: i32) -> (i32, i32) {
    %c0_i32 = arith.constant 0 : i32
    %c0_i32_0 = arith.constant 0 : i32
    %c0_i32_1 = arith.constant 0 : i32
    return %c0_i32, %c0_i32_0 : i32, i32
  }
  func.func @transform_5(%arg0: i32) -> (i32, i32, i32, i32) {
    %c0_i32 = arith.constant 0 : i32
    %c0_i32_0 = arith.constant 0 : i32
    %c0_i32_1 = arith.constant 0 : i32
    %c0_i32_2 = arith.constant 0 : i32
    %c0_i32_3 = arith.constant 0 : i32
    return %c0_i32, %c0_i32_0, %c0_i32_1, %c0_i32_2 : i32, i32, i32, i32
  }
  func.func @transform_6(%arg0: i32) -> (i32, i32) {
    %c0_i32 = arith.constant 0 : i32
    %c0_i32_0 = arith.constant 0 : i32
    %c0_i32_1 = arith.constant 0 : i32
    return %c0_i32, %c0_i32_0 : i32, i32
  }
  func.func @transform_7(%arg0: i32) -> (i32, i32) {
    %c0_i32 = arith.constant 0 : i32
    %c0_i32_0 = arith.constant 0 : i32
    %c0_i32_1 = arith.constant 0 : i32
    return %c0_i32, %c0_i32_0 : i32, i32
  }
  func.func @transform_8(%arg0: i32) -> (i32, i32) {
    %c0_i32 = arith.constant 0 : i32
    %c0_i32_0 = arith.constant 0 : i32
    %c0_i32_1 = arith.constant 0 : i32
    return %c0_i32, %c0_i32_0 : i32, i32
  }
  func.func @transform_9(%arg0: i32) -> (i32, i32, i32) {
    %c0_i32 = arith.constant 0 : i32
    %c0_i32_0 = arith.constant 0 : i32
    %c0_i32_1 = arith.constant 0 : i32
    return %arg0, %c0_i32, %c0_i32_0 : i32, i32, i32
  }
  func.func @transform_10(%arg0: i32) -> (i32, i32, i32, i32) {
    %c0_i32 = arith.constant 0 : i32
    %c0_i32_0 = arith.constant 0 : i32
    %c0_i32_1 = arith.constant 0 : i32
    %c0_i32_2 = arith.constant 0 : i32
    return %c0_i32, %arg0, %c0_i32_0, %c0_i32_1 : i32, i32, i32, i32
  }
}

</mosaic_0001>

<llo_original>
// kernel: shuffle_self_attention_layer_v2.1
$region0: #{shuffle_self_attention_layer_v2.1}
  #allocation0 [shape = 'u32[]', space=smem, size = 0x4, offset = 0x4, fixed_abs, tag = 'smem constant byte address 0x4 - core index']
  #allocation1 [shape = 'u32[144,128]{1,0:T(1,128)}', space=vmem, size = 0x12000, scoped, tag = 'internal scratch']
  #allocation4 [shape = 's32[]', space=sflag, size = 0x4, offset = 0, fixed_abs, tag = 'sflag constant byte address 0x0 - dummy sync flag']
  %s0 = inlined_call_operand.vmem [shape: f32[2,16,12], index: 0, kind: input, shape index: {}]
  %s1 = inlined_call_operand.vmem [shape: f32[2,3,16], index: 1, kind: input, shape index: {}]
  %s2 = inlined_call_operand.vmem [shape: f32[12,16], index: 2, kind: input, shape index: {}]
  %s3 = inlined_call_operand.vmem [shape: f32[12,16], index: 3, kind: input, shape index: {}]
  %s4 = inlined_call_operand.vmem [shape: f32[12,16], index: 4, kind: input, shape index: {}]
  %s5 = inlined_call_operand.vmem [shape: f32[2,2,4,16], index: 5, kind: input, shape index: {}]
  %s6 = inlined_call_operand.vmem [shape: f32[1,4], index: 6, kind: input, shape index: {}]
  %s7 = inlined_call_operand.vmem [shape: f32[1,16], index: 7, kind: input, shape index: {}]
  %s8 = inlined_call_operand.vmem [shape: f32[1,16], index: 8, kind: input, shape index: {}]
  %s9 = inlined_call_operand.vmem [shape: f32[2,3,16], index: 9, kind: output, shape index: {0}]
  %s10 = inlined_call_operand.hbm [shape: f32[2,2,16,16], index: 10, kind: output, shape index: {1}]
  %11 = xla_tuple %s9, %s10
  %s12 = sld [smem:[#allocation0]]
  $region77: #{shuffle_self_attention_layer_v2.1} parent=0
    _
  %s14 = ssub.s32 1, %s12
  %s15 = scalar_select 0, %s14, %s12
  $region1: #{shuffle_self_attention_layer_v2.1} parent=0
    #allocation2 [shape = 'u8[32768]{0}', space=vmem, size = 0x8000, scoped, tag = 'output window, operand 1']
    #allocation3 [shape = 's32[2]{0}', space=sflag, size = 0x8, scoped, tag = 'scoped memory for shuffle_self_attention_layer_v2.1']
    %16 = vsyncpa [#allocation3], 0
    %s17 = scalar_lea.sflag [#allocation3], 1
    %18 = vsyncpa %s17, 0
    loop: start=0, step=1, limit=4
    $region2: #{shuffle_self_attention_layer_v2.1} parent=1 // loop_pre_header
      _
    $region3: #{shuffle_self_attention_layer_v2.1} parent=1 // loop_header
      %s20 = sphi 0, %s24
      %p21 = scmp.ge.s32.totalorder %s20, 4
      %s30 = sphi 0, %s32
      %s33 = sphi 0, %s30
      %s34 = sphi 0, %s33
      %s50 = sphi 0, %s34
      %s56 = sphi 0, %s58
      %s59 = sphi 0, %s56
      %s60 = sphi 0, %s59
      %s76 = sphi 0, %s60
      %s80 = sphi 0, %s80
      %s82 = sphi 0, %s80
      %s83 = sphi 0, %s82
      %s97 = sphi 0, %s83
      %s101 = sphi 0, %s101
      %s103 = sphi 0, %s101
      %s104 = sphi 0, %s103
      %s118 = sphi 0, %s104
      %s122 = sphi 0, %s122
      %s124 = sphi 0, %s122
      %s125 = sphi 0, %s124
      %s139 = sphi 0, %s125
      %s143 = sphi 0, %s143
      %s145 = sphi 0, %s143
      %s146 = sphi 0, %s145
      %s160 = sphi 0, %s146
      %s164 = sphi 0, %s164
      %s166 = sphi 0, %s164
      %s167 = sphi 0, %s166
      %s181 = sphi 0, %s167
      %s185 = sphi 0, %s185
      %s187 = sphi 0, %s185
      %s188 = sphi 0, %s187
      %s202 = sphi 0, %s188
      %s206 = sphi 0, %s206
      %s208 = sphi 0, %s206
      %s209 = sphi 0, %s208
      %s223 = sphi 0, %s209
      %s229 = sphi 0, %s231
      %s232 = sphi 0, %s229
      %s233 = sphi 0, %s232
      %s249 = sphi 0, %s233
      %s255 = sphi 0, %s257
      %s258 = sphi 0, %s255
      %s259 = sphi 0, %s258
      %s275 = sphi 0, %s259
    $region4: #{shuffle_self_attention_layer_v2.1} parent=1 // loop_header_branch
      %23 = sbr.rel (%p21) target = $region8
    $region5: #{shuffle_self_attention_layer_v2.1} parent=1 // loop_body
      %s25 = ssub.s32 %s20, 1
      %s26 = ssub.s32 %s20, 2
      %s27 = sadd.s32 %s20, 1
      %s28 = ssub.s32 %s20, %s27
      %p29 = scmp.eq.s32.totalorder %s28, 0
      %s31 = sadd.s32 %s30, 1
      %s32 = scalar_select %p29, %s30, %s31
      %p35 = pneg %p29
      %p36 = scmp.eq.s32.totalorder %s20, 1
      %p37 = por %p35, %p36
      %p38 = scmp.ne.s32.totalorder %s30, %s33
      %p39 = scmp.eq.s32.totalorder %s20, 0
      %p40 = por %p38, %p39
      %p41 = scmp.ne.s32.totalorder %s30, %s33
      %p42 = scmp.eq.s32.totalorder %s25, 1
      %p43 = por %p41, %p42
      %p44 = scmp.ne.s32.totalorder %s33, %s34
      %p45 = scmp.eq.s32.totalorder %s25, 0
      %p46 = por %p44, %p45
      %p47 = scmp.ne.s32.totalorder %s33, %s34
      %p48 = scmp.eq.s32.totalorder %s26, 1
      %p49 = por %p47, %p48
      %p51 = scmp.ne.s32.totalorder %s34, %s50
      %p52 = scmp.eq.s32.totalorder %s26, 0
      %p53 = por %p51, %p52
      %s54 = ssub.s32 %s20, %s27
      %p55 = scmp.eq.s32.totalorder %s54, 0
      %s57 = sadd.s32 %s56, 1
      %s58 = scalar_select %p55, %s56, %s57
      %p61 = pneg %p55
      %p62 = scmp.eq.s32.totalorder %s20, 1
      %p63 = por %p61, %p62
      %p64 = scmp.ne.s32.totalorder %s56, %s59
      %p65 = scmp.eq.s32.totalorder %s20, 0
      %p66 = por %p64, %p65
      %p67 = scmp.ne.s32.totalorder %s56, %s59
      %p68 = scmp.eq.s32.totalorder %s25, 1
      %p69 = por %p67, %p68
      %p70 = scmp.ne.s32.totalorder %s59, %s60
      %p71 = scmp.eq.s32.totalorder %s25, 0
      %p72 = por %p70, %p71
      %p73 = scmp.ne.s32.totalorder %s59, %s60
      %p74 = scmp.eq.s32.totalorder %s26, 1
      %p75 = por %p73, %p74
      %p77 = scmp.ne.s32.totalorder %s60, %s76
      %p78 = scmp.eq.s32.totalorder %s26, 0
      %p79 = por %p77, %p78
      %s81 = sadd.s32 %s80, 1
      %p84 = scmp.eq.s32.totalorder %s20, 1
      %p85 = scmp.ne.s32.totalorder %s80, %s82
      %p86 = scmp.eq.s32.totalorder %s20, 0
      %p87 = por %p85, %p86
      %p88 = scmp.ne.s32.totalorder %s80, %s82
      %p89 = scmp.eq.s32.totalorder %s25, 1
      %p90 = por %p88, %p89
      %p91 = scmp.ne.s32.totalorder %s82, %s83
      %p92 = scmp.eq.s32.totalorder %s25, 0
      %p93 = por %p91, %p92
      %p94 = scmp.ne.s32.totalorder %s82, %s83
      %p95 = scmp.eq.s32.totalorder %s26, 1
      %p96 = por %p94, %p95
      %p98 = scmp.ne.s32.totalorder %s83, %s97
      %p99 = scmp.eq.s32.totalorder %s26, 0
      %p100 = por %p98, %p99
      %s102 = sadd.s32 %s101, 1
      %p105 = scmp.eq.s32.totalorder %s20, 1
      %p106 = scmp.ne.s32.totalorder %s101, %s103
      %p107 = scmp.eq.s32.totalorder %s20, 0
      %p108 = por %p106, %p107
      %p109 = scmp.ne.s32.totalorder %s101, %s103
      %p110 = scmp.eq.s32.totalorder %s25, 1
      %p111 = por %p109, %p110
      %p112 = scmp.ne.s32.totalorder %s103, %s104
      %p113 = scmp.eq.s32.totalorder %s25, 0
      %p114 = por %p112, %p113
      %p115 = scmp.ne.s32.totalorder %s103, %s104
      %p116 = scmp.eq.s32.totalorder %s26, 1
      %p117 = por %p115, %p116
      %p119 = scmp.ne.s32.totalorder %s104, %s118
      %p120 = scmp.eq.s32.totalorder %s26, 0
      %p121 = por %p119, %p120
      %s123 = sadd.s32 %s122, 1
      %p126 = scmp.eq.s32.totalorder %s20, 1
      %p127 = scmp.ne.s32.totalorder %s122, %s124
      %p128 = scmp.eq.s32.totalorder %s20, 0
      %p129 = por %p127, %p128
      %p130 = scmp.ne.s32.totalorder %s122, %s124
      %p131 = scmp.eq.s32.totalorder %s25, 1
      %p132 = por %p130, %p131
      %p133 = scmp.ne.s32.totalorder %s124, %s125
      %p134 = scmp.eq.s32.totalorder %s25, 0
      %p135 = por %p133, %p134
      %p136 = scmp.ne.s32.totalorder %s124, %s125
      %p137 = scmp.eq.s32.totalorder %s26, 1
      %p138 = por %p136, %p137
      %p140 = scmp.ne.s32.totalorder %s125, %s139
      %p141 = scmp.eq.s32.totalorder %s26, 0
      %p142 = por %p140, %p141
      %s144 = sadd.s32 %s143, 1
      %p147 = scmp.eq.s32.totalorder %s20, 1
      %p148 = scmp.ne.s32.totalorder %s143, %s145
      %p149 = scmp.eq.s32.totalorder %s20, 0
      %p150 = por %p148, %p149
      %p151 = scmp.ne.s32.totalorder %s143, %s145
      %p152 = scmp.eq.s32.totalorder %s25, 1
      %p153 = por %p151, %p152
      %p154 = scmp.ne.s32.totalorder %s145, %s146
      %p155 = scmp.eq.s32.totalorder %s25, 0
      %p156 = por %p154, %p155
      %p157 = scmp.ne.s32.totalorder %s145, %s146
      %p158 = scmp.eq.s32.totalorder %s26, 1
      %p159 = por %p157, %p158
      %p161 = scmp.ne.s32.totalorder %s146, %s160
      %p162 = scmp.eq.s32.totalorder %s26, 0
      %p163 = por %p161, %p162
      %s165 = sadd.s32 %s164, 1
      %p168 = scmp.eq.s32.totalorder %s20, 1
      %p169 = scmp.ne.s32.totalorder %s164, %s166
      %p170 = scmp.eq.s32.totalorder %s20, 0
      %p171 = por %p169, %p170
      %p172 = scmp.ne.s32.totalorder %s164, %s166
      %p173 = scmp.eq.s32.totalorder %s25, 1
      %p174 = por %p172, %p173
      %p175 = scmp.ne.s32.totalorder %s166, %s167
      %p176 = scmp.eq.s32.totalorder %s25, 0
      %p177 = por %p175, %p176
      %p178 = scmp.ne.s32.totalorder %s166, %s167
      %p179 = scmp.eq.s32.totalorder %s26, 1
      %p180 = por %p178, %p179
      %p182 = scmp.ne.s32.totalorder %s167, %s181
      %p183 = scmp.eq.s32.totalorder %s26, 0
      %p184 = por %p182, %p183
      %s186 = sadd.s32 %s185, 1
      %p189 = scmp.eq.s32.totalorder %s20, 1
      %p190 = scmp.ne.s32.totalorder %s185, %s187
      %p191 = scmp.eq.s32.totalorder %s20, 0
      %p192 = por %p190, %p191
      %p193 = scmp.ne.s32.totalorder %s185, %s187
      %p194 = scmp.eq.s32.totalorder %s25, 1
      %p195 = por %p193, %p194
      %p196 = scmp.ne.s32.totalorder %s187, %s188
      %p197 = scmp.eq.s32.totalorder %s25, 0
      %p198 = por %p196, %p197
      %p199 = scmp.ne.s32.totalorder %s187, %s188
      %p200 = scmp.eq.s32.totalorder %s26, 1
      %p201 = por %p199, %p200
      %p203 = scmp.ne.s32.totalorder %s188, %s202
      %p204 = scmp.eq.s32.totalorder %s26, 0
      %p205 = por %p203, %p204
      %s207 = sadd.s32 %s206, 1
      %p210 = scmp.eq.s32.totalorder %s20, 1
      %p211 = scmp.ne.s32.totalorder %s206, %s208
      %p212 = scmp.eq.s32.totalorder %s20, 0
      %p213 = por %p211, %p212
      %p214 = scmp.ne.s32.totalorder %s206, %s208
      %p215 = scmp.eq.s32.totalorder %s25, 1
      %p216 = por %p214, %p215
      %p217 = scmp.ne.s32.totalorder %s208, %s209
      %p218 = scmp.eq.s32.totalorder %s25, 0
      %p219 = por %p217, %p218
      %p220 = scmp.ne.s32.totalorder %s208, %s209
      %p221 = scmp.eq.s32.totalorder %s26, 1
      %p222 = por %p220, %p221
      %p224 = scmp.ne.s32.totalorder %s209, %s223
      %p225 = scmp.eq.s32.totalorder %s26, 0
      %p226 = por %p224, %p225
      %s227 = ssub.s32 %s20, %s27
      %p228 = scmp.eq.s32.totalorder %s227, 0
      %s230 = sadd.s32 %s229, 1
      %s231 = scalar_select %p228, %s229, %s230
      %p234 = pneg %p228
      %p235 = scmp.eq.s32.totalorder %s20, 1
      %p236 = por %p234, %p235
      %p237 = scmp.ne.s32.totalorder %s229, %s232
      %p238 = scmp.eq.s32.totalorder %s20, 0
      %p239 = por %p237, %p238
      %p240 = scmp.ne.s32.totalorder %s229, %s232
      %p241 = scmp.eq.s32.totalorder %s25, 1
      %p242 = por %p240, %p241
      %p243 = scmp.ne.s32.totalorder %s232, %s233
      %p244 = scmp.eq.s32.totalorder %s25, 0
      %p245 = por %p243, %p244
      %p246 = scmp.ne.s32.totalorder %s232, %s233
      %p247 = scmp.eq.s32.totalorder %s26, 1
      %p248 = por %p246, %p247
      %p250 = scmp.ne.s32.totalorder %s233, %s249
      %p251 = scmp.eq.s32.totalorder %s26, 0
      %p252 = por %p250, %p251
      %s253 = ssub.s32 %s20, %s27
      %p254 = scmp.eq.s32.totalorder %s253, 0
      %s256 = sadd.s32 %s255, 1
      %s257 = scalar_select %p254, %s255, %s256
      %p260 = pneg %p254
      %p261 = scmp.eq.s32.totalorder %s20, 1
      %p262 = por %p260, %p261
      %p263 = scmp.ne.s32.totalorder %s255, %s258
      %p264 = scmp.eq.s32.totalorder %s20, 0
      %p265 = por %p263, %p264
      %p266 = scmp.ne.s32.totalorder %s255, %s258
      %p267 = scmp.eq.s32.totalorder %s25, 1
      %p268 = por %p266, %p267
      %p269 = scmp.ne.s32.totalorder %s258, %s259
      %p270 = scmp.eq.s32.totalorder %s25, 0
      %p271 = por %p269, %p270
      %p272 = scmp.ne.s32.totalorder %s258, %s259
      %p273 = scmp.eq.s32.totalorder %s26, 1
      %p274 = por %p272, %p273
      %p276 = scmp.ne.s32.totalorder %s259, %s275
      %p277 = scmp.eq.s32.totalorder %s26, 0
      %p278 = por %p276, %p277
      %p279 = scmp.le.s32.totalorder 1, %s20
      %p280 = scmp.lt.s32.totalorder %s20, 3
      %p281 = pnand %p279, %p280
      %p282 = pneg %p281
      // Predicated region
      $region9: #{shuffle_self_attention_layer_v2.1} parent=5 // pred_check
        _
      $region10: #{shuffle_self_attention_layer_v2.1} parent=5 // pred_check_branch
        %284 = sbr.rel (%p281) target = $region12
      $region11: #{shuffle_self_attention_layer_v2.1} parent=5 // pred_region
        %s285 = ssub.s32 %s20, 1
        // Predicated region
        $region13: #{shuffle_self_attention_layer_v2.1} parent=11 // pred_check
          %p286 = pneg %p93
        $region14: #{shuffle_self_attention_layer_v2.1} parent=11 // pred_check_branch
          %288 = sbr.rel (%p286) target = $region16
        $region15: #{shuffle_self_attention_layer_v2.1} parent=11 // pred_region
          _
        $region16: #{shuffle_self_attention_layer_v2.1} parent=11 // pred_fallthru
          _
        // Predicated region
        $region17: #{shuffle_self_attention_layer_v2.1} parent=11 // pred_check
          %p289 = pneg %p114
        $region18: #{shuffle_self_attention_layer_v2.1} parent=11 // pred_check_branch
          %291 = sbr.rel (%p289) target = $region20
        $region19: #{shuffle_self_attention_layer_v2.1} parent=11 // pred_region
          _
        $region20: #{shuffle_self_attention_layer_v2.1} parent=11 // pred_fallthru
          _
        // Predicated region
        $region21: #{shuffle_self_attention_layer_v2.1} parent=11 // pred_check
          %p292 = pneg %p135
        $region22: #{shuffle_self_attention_layer_v2.1} parent=11 // pred_check_branch
          %294 = sbr.rel (%p292) target = $region24
        $region23: #{shuffle_self_attention_layer_v2.1} parent=11 // pred_region
          _
        $region24: #{shuffle_self_attention_layer_v2.1} parent=11 // pred_fallthru
          _
        // Predicated region
        $region25: #{shuffle_self_attention_layer_v2.1} parent=11 // pred_check
          %p295 = pneg %p156
        $region26: #{shuffle_self_attention_layer_v2.1} parent=11 // pred_check_branch
          %297 = sbr.rel (%p295) target = $region28
        $region27: #{shuffle_self_attention_layer_v2.1} parent=11 // pred_region
          _
        $region28: #{shuffle_self_attention_layer_v2.1} parent=11 // pred_fallthru
          _
        // Predicated region
        $region29: #{shuffle_self_attention_layer_v2.1} parent=11 // pred_check
          %p298 = pneg %p177
        $region30: #{shuffle_self_attention_layer_v2.1} parent=11 // pred_check_branch
          %300 = sbr.rel (%p298) target = $region32
        $region31: #{shuffle_self_attention_layer_v2.1} parent=11 // pred_region
          _
        $region32: #{shuffle_self_attention_layer_v2.1} parent=11 // pred_fallthru
          _
        // Predicated region
        $region33: #{shuffle_self_attention_layer_v2.1} parent=11 // pred_check
          %p301 = pneg %p198
        $region34: #{shuffle_self_attention_layer_v2.1} parent=11 // pred_check_branch
          %303 = sbr.rel (%p301) target = $region36
        $region35: #{shuffle_self_attention_layer_v2.1} parent=11 // pred_region
          _
        $region36: #{shuffle_self_attention_layer_v2.1} parent=11 // pred_fallthru
          _
        // Predicated region
        $region37: #{shuffle_self_attention_layer_v2.1} parent=11 // pred_check
          %p304 = pneg %p219
        $region38: #{shuffle_self_attention_layer_v2.1} parent=11 // pred_check_branch
          %306 = sbr.rel (%p304) target = $region40
        $region39: #{shuffle_self_attention_layer_v2.1} parent=11 // pred_region
          _
        $region40: #{shuffle_self_attention_layer_v2.1} parent=11 // pred_fallthru
          _
      $region12: #{shuffle_self_attention_layer_v2.1} parent=5 // pred_fallthru
        _
      %p307 = scmp.lt.s32.totalorder %s20, 2
      // Predicated region
      $region41: #{shuffle_self_attention_layer_v2.1} parent=5 // pred_check
        %p308 = pneg %p307
      $region42: #{shuffle_self_attention_layer_v2.1} parent=5 // pred_check_branch
        %310 = sbr.rel (%p308) target = $region44
      $region43: #{shuffle_self_attention_layer_v2.1} parent=5 // pred_region
        // Predicated region
        $region45: #{shuffle_self_attention_layer_v2.1} parent=43 // pred_check
          %p311 = pneg %p40
        $region46: #{shuffle_self_attention_layer_v2.1} parent=43 // pred_check_branch
          %313 = sbr.rel (%p311) target = $region48
        $region47: #{shuffle_self_attention_layer_v2.1} parent=43 // pred_region
          %p314 = scmp.lt.s32.totalorder %s20, 1
          %s315 = scalar_select %p314, %s20, 1
          %s316 = smul.addr %s315, 2
          %s317 = smul.addr %s316, 8
          %s318 = scalar_lea.vmem %s0, %s317
        $region48: #{shuffle_self_attention_layer_v2.1} parent=43 // pred_fallthru
          _
        // Predicated region
        $region49: #{shuffle_self_attention_layer_v2.1} parent=43 // pred_check
          %p319 = pneg %p66
        $region50: #{shuffle_self_attention_layer_v2.1} parent=43 // pred_check_branch
          %321 = sbr.rel (%p319) target = $region52
        $region51: #{shuffle_self_attention_layer_v2.1} parent=43 // pred_region
          %p322 = scmp.lt.s32.totalorder %s20, 1
          %s323 = scalar_select %p322, %s20, 1
          %s324 = smul.addr %s323, 4
          %s325 = scalar_lea.vmem %s1, %s324
        $region52: #{shuffle_self_attention_layer_v2.1} parent=43 // pred_fallthru
          _
      $region44: #{shuffle_self_attention_layer_v2.1} parent=5 // pred_fallthru
        _
      %p326 = scmp.le.s32.totalorder 1, %s20
      %p327 = scmp.lt.s32.totalorder %s20, 3
      %p328 = pnand %p326, %p327
      %p329 = pneg %p328
      // Predicated region
      $region53: #{shuffle_self_attention_layer_v2.1} parent=5 // pred_check
        _
      $region54: #{shuffle_self_attention_layer_v2.1} parent=5 // pred_check_branch
        %331 = sbr.rel (%p328) target = $region56
      $region55: #{shuffle_self_attention_layer_v2.1} parent=5 // pred_region
        %s332 = ssub.s32 %s20, 1
        %p333 = scmp.lt.s32.totalorder %s25, 1
        %s334 = scalar_select %p333, %s25, 1
        %s335 = smul.addr %s334, 2
        %s336 = smul.addr %s335, 8
        %s337 = scalar_lea.vmem %s0, %s336
        %p338 = pneg %p46
        %p339 = pneg %p43
        %p340 = scmp.lt.s32.totalorder %s25, 1
        %s341 = scalar_select %p340, %s25, 1
        %s342 = smul.addr %s341, 4
        %s343 = scalar_lea.vmem %s1, %s342
        %p344 = pneg %p72
        %p345 = pneg %p69
        %p346 = pneg %p93
        %p347 = pneg %p90
        %p348 = pneg %p114
        %p349 = pneg %p111
        %p350 = pneg %p135
        %p351 = pneg %p132
        %p352 = pneg %p156
        %p353 = pneg %p153
        %p354 = pneg %p177
        %p355 = pneg %p174
        %p356 = pneg %p198
        %p357 = pneg %p195
        %p358 = pneg %p219
        %p359 = pneg %p216
        %p360 = pneg %p245
        %p361 = pneg %p242
        %p362 = scmp.lt.s32.totalorder %s25, 1
        %s363 = scalar_select %p362, %s25, 1
        %s364 = smul.addr %s363, 4
        %s365 = scalar_lea.vmem %s9, %s364
        %p366 = pneg %p271
        %p367 = pneg %p268
        %s368 = sand.u32 %s258, 1
        %s369 = scalar_lea.sflag [#allocation3], %s368
        %s370 = sand.u32 %s258, 1
        %s371 = smul.addr %s370, 32
        %s372 = scalar_lea.vmem [#allocation2], %s371
        %p373 = scmp.lt.s32.totalorder %s25, 1
        %s374 = scalar_select %p373, %s25, 1
        %s375 = smul.addr %s374, 2
        %s376 = smul.addr %s375, 8
        %s377 = scalar_lea.vmem %s0, %s376
        %p378 = scmp.lt.s32.totalorder %s25, 1
        %s379 = scalar_select %p378, %s25, 1
        %s380 = smul.addr %s379, 4
        %s381 = scalar_lea.vmem %s1, %s380
        %p382 = scmp.lt.s32.totalorder %s25, 1
        %s383 = scalar_select %p382, %s25, 1
        %s384 = smul.addr %s383, 4
        %s385 = scalar_lea.vmem %s9, %s384
        %v386 = vld [vmem:[%s377] sm:$0xff]
        %v387 = vld [vmem:[%s377 + $0x8] sm:$0xff]
        %v388 = vld [vmem:[%s2] sm:$0xff]
        %v389 = vld [vmem:[%s2 + $0x8] sm:$0xf]
        %vm390 = vcmask 97280
        %v392 = vsel %vm390, %v386, 0
        %v395 = vsel %vm390, %v387, 0
        %vm397 = vcmask 1043456
        %v399 = vsel %vm397, %v389, 0
        %401 = vmatprep.subr.mxu0 0.0
        %402 = vmatpush1.msra.mxu0 %v388
        %403 = vmatprep.subr.mxu0 0.0
        %404 = vmatpush1.msra.mxu0 %v399
        %405 = vmatprep.subr.mxu0 0.0
        %406 = vmatpush1.msra.mxu0 0.0
        %407 = vmatprep.subr.mxu0 0.0
        %408 = vmatpush1.msra.mxu0 0.0
        %409 = vmatprep.subr.mxu0 0.0
        %410 = vmatpush1.msra.mxu0 0.0
        %411 = vmatprep.subr.mxu0 0.0
        %412 = vmatpush1.msra.mxu0 0.0
        %413 = vmatprep.subr.mxu0 0.0
        %414 = vmatpush1.msra.mxu0 0.0
        %415 = vmatprep.subr.mxu0 0.0
        %416 = vmatpush1.msra.mxu0 0.0
        %417 = vmatprep.subr.mxu0 0.0
        %418 = vmatpush1.msra.mxu0 0.0
        %419 = vmatprep.subr.mxu0 0.0
        %420 = vmatpush1.msra.mxu0 0.0
        %421 = vmatprep.subr.mxu0 0.0
        %422 = vmatpush1.msra.mxu0 0.0
        %423 = vmatprep.subr.mxu0 0.0
        %424 = vmatpush1.msra.mxu0 0.0
        %425 = vmatprep.subr.mxu0 0.0
        %426 = vmatpush1.msra.mxu0 0.0
        %427 = vmatprep.subr.mxu0 0.0
        %428 = vmatpush1.msra.mxu0 0.0
        %429 = vmatprep.subr.mxu0 0.0
        %430 = vmatpush1.msra.mxu0 0.0
        %431 = vmatprep.subr.mxu0 0.0
        %432 = vmatpush1.msra.mxu0 0.0
        %433 = vmatprep.subr.mxu0 0.0
        %434 = vmatpush1.msra.mxu0 0.0
        %435 = vmatprep.subr.mxu0 0.0
        %436 = vmatpush1.msra.mxu0 0.0
        %437 = vmatprep.subr.mxu0 0.0
        %438 = vmatpush1.msra.mxu0 0.0
        %439 = vmatprep.subr.mxu0 0.0
        %440 = vmatpush1.msra.mxu0 0.0
        %441 = vmatprep.subr.mxu0 0.0
        %442 = vmatpush1.msra.mxu0 0.0
        %443 = vmatprep.subr.mxu0 0.0
        %444 = vmatpush1.msra.mxu0 0.0
        %445 = vmatprep.subr.mxu0 0.0
        %446 = vmatpush1.msra.mxu0 0.0
        %447 = vmatprep.subr.mxu0 0.0
        %448 = vmatpush1.msra.mxu0 0.0
        %449 = vmatprep.subr.mxu0 0.0
        %450 = vmatpush1.msra.mxu0 0.0
        %451 = vmatprep.subr.mxu0 0.0
        %452 = vmatpush1.msra.mxu0 0.0
        %453 = vmatprep.subr.mxu0 0.0
        %454 = vmatpush1.msra.mxu0 0.0
        %455 = vmatprep.subr.mxu0 0.0
        %456 = vmatpush1.msra.mxu0 0.0
        %457 = vmatprep.subr.mxu0 0.0
        %458 = vmatpush1.msra.mxu0 0.0
        %459 = vmatprep.subr.mxu0 0.0
        %460 = vmatpush1.msra.mxu0 0.0
        %461 = vmatprep.subr.mxu0 0.0
        %462 = vmatpush1.msra.mxu0 0.0
        %463 = vmatprep.subr.mxu0 0.0
        %464 = vmatpush1.msra.mxu0 0.0
        %465 = vmatprep.mubr.f32.mxu0 0.0
        %466 = vmatmul.mubr.f32.gmra.mrb[0].mxu0 %v392
        %v467 = vpop.f32.mrb[0].mxu0
        %v468 = vadd.f32 0.0, %v467
        %v469 = vpop.f32.mrb[0].mxu0
        %470 = vmatprep.mubr.f32.mxu0 0.0
        %471 = vmatmul.mubr.f32.gmra.mrb[0].mxu0 %v395
        %v472 = vpop.f32.mrb[0].mxu0
        %v473 = vadd.f32 0.0, %v472
        %v474 = vpop.f32.mrb[0].mxu0
        %475 = vdwg.mxu0
        %v476 = vld [vmem:[%s3] sm:$0xff]
        %v477 = vld [vmem:[%s3 + $0x8] sm:$0xf]
        %v479 = vsel %vm397, %v477, 0
        %481 = vmatprep.subr.mxu0 0.0
        %482 = vmatpush1.msra.mxu0 %v476
        %483 = vmatprep.subr.mxu0 0.0
        %484 = vmatpush1.msra.mxu0 %v479
        %485 = vmatprep.subr.mxu0 0.0
        %486 = vmatpush1.msra.mxu0 0.0
        %487 = vmatprep.subr.mxu0 0.0
        %488 = vmatpush1.msra.mxu0 0.0
        %489 = vmatprep.subr.mxu0 0.0
        %490 = vmatpush1.msra.mxu0 0.0
        %491 = vmatprep.subr.mxu0 0.0
        %492 = vmatpush1.msra.mxu0 0.0
        %493 = vmatprep.subr.mxu0 0.0
        %494 = vmatpush1.msra.mxu0 0.0
        %495 = vmatprep.subr.mxu0 0.0
        %496 = vmatpush1.msra.mxu0 0.0
        %497 = vmatprep.subr.mxu0 0.0
        %498 = vmatpush1.msra.mxu0 0.0
        %499 = vmatprep.subr.mxu0 0.0
        %500 = vmatpush1.msra.mxu0 0.0
        %501 = vmatprep.subr.mxu0 0.0
        %502 = vmatpush1.msra.mxu0 0.0
        %503 = vmatprep.subr.mxu0 0.0
        %504 = vmatpush1.msra.mxu0 0.0
        %505 = vmatprep.subr.mxu0 0.0
        %506 = vmatpush1.msra.mxu0 0.0
        %507 = vmatprep.subr.mxu0 0.0
        %508 = vmatpush1.msra.mxu0 0.0
        %509 = vmatprep.subr.mxu0 0.0
        %510 = vmatpush1.msra.mxu0 0.0
        %511 = vmatprep.subr.mxu0 0.0
        %512 = vmatpush1.msra.mxu0 0.0
        %513 = vmatprep.subr.mxu0 0.0
        %514 = vmatpush1.msra.mxu0 0.0
        %515 = vmatprep.subr.mxu0 0.0
        %516 = vmatpush1.msra.mxu0 0.0
        %517 = vmatprep.subr.mxu0 0.0
        %518 = vmatpush1.msra.mxu0 0.0
        %519 = vmatprep.subr.mxu0 0.0
        %520 = vmatpush1.msra.mxu0 0.0
        %521 = vmatprep.subr.mxu0 0.0
        %522 = vmatpush1.msra.mxu0 0.0
        %523 = vmatprep.subr.mxu0 0.0
        %524 = vmatpush1.msra.mxu0 0.0
        %525 = vmatprep.subr.mxu0 0.0
        %526 = vmatpush1.msra.mxu0 0.0
        %527 = vmatprep.subr.mxu0 0.0
        %528 = vmatpush1.msra.mxu0 0.0
        %529 = vmatprep.subr.mxu0 0.0
        %530 = vmatpush1.msra.mxu0 0.0
        %531 = vmatprep.subr.mxu0 0.0
        %532 = vmatpush1.msra.mxu0 0.0
        %533 = vmatprep.subr.mxu0 0.0
        %534 = vmatpush1.msra.mxu0 0.0
        %535 = vmatprep.subr.mxu0 0.0
        %536 = vmatpush1.msra.mxu0 0.0
        %537 = vmatprep.subr.mxu0 0.0
        %538 = vmatpush1.msra.mxu0 0.0
        %539 = vmatprep.subr.mxu0 0.0
        %540 = vmatpush1.msra.mxu0 0.0
        %541 = vmatprep.subr.mxu0 0.0
        %542 = vmatpush1.msra.mxu0 0.0
        %543 = vmatprep.subr.mxu0 0.0
        %544 = vmatpush1.msra.mxu0 0.0
        %545 = vmatprep.mubr.f32.mxu0 0.0
        %546 = vmatmul.mubr.f32.gmra.mrb[0].mxu0 %v392
        %v547 = vpop.f32.mrb[0].mxu0
        %v548 = vadd.f32 0.0, %v547
        %v549 = vpop.f32.mrb[0].mxu0
        %550 = vmatprep.mubr.f32.mxu0 0.0
        %551 = vmatmul.mubr.f32.gmra.mrb[0].mxu0 %v395
        %v552 = vpop.f32.mrb[0].mxu0
        %v553 = vadd.f32 0.0, %v552
        %v554 = vpop.f32.mrb[0].mxu0
        %555 = vdwg.mxu0
        %v556 = vld [vmem:[%s4] sm:$0xff]
        %v557 = vld [vmem:[%s4 + $0x8] sm:$0xf]
        %v559 = vsel %vm397, %v557, 0
        %561 = vmatprep.subr.mxu0 0.0
        %562 = vmatpush1.msra.mxu0 %v556
        %563 = vmatprep.subr.mxu0 0.0
        %564 = vmatpush1.msra.mxu0 %v559
        %565 = vmatprep.subr.mxu0 0.0
        %566 = vmatpush1.msra.mxu0 0.0
        %567 = vmatprep.subr.mxu0 0.0
        %568 = vmatpush1.msra.mxu0 0.0
        %569 = vmatprep.subr.mxu0 0.0
        %570 = vmatpush1.msra.mxu0 0.0
        %571 = vmatprep.subr.mxu0 0.0
        %572 = vmatpush1.msra.mxu0 0.0
        %573 = vmatprep.subr.mxu0 0.0
        %574 = vmatpush1.msra.mxu0 0.0
        %575 = vmatprep.subr.mxu0 0.0
        %576 = vmatpush1.msra.mxu0 0.0
        %577 = vmatprep.subr.mxu0 0.0
        %578 = vmatpush1.msra.mxu0 0.0
        %579 = vmatprep.subr.mxu0 0.0
        %580 = vmatpush1.msra.mxu0 0.0
        %581 = vmatprep.subr.mxu0 0.0
        %582 = vmatpush1.msra.mxu0 0.0
        %583 = vmatprep.subr.mxu0 0.0
        %584 = vmatpush1.msra.mxu0 0.0
        %585 = vmatprep.subr.mxu0 0.0
        %586 = vmatpush1.msra.mxu0 0.0
        %587 = vmatprep.subr.mxu0 0.0
        %588 = vmatpush1.msra.mxu0 0.0
        %589 = vmatprep.subr.mxu0 0.0
        %590 = vmatpush1.msra.mxu0 0.0
        %591 = vmatprep.subr.mxu0 0.0
        %592 = vmatpush1.msra.mxu0 0.0
        %593 = vmatprep.subr.mxu0 0.0
        %594 = vmatpush1.msra.mxu0 0.0
        %595 = vmatprep.subr.mxu0 0.0
        %596 = vmatpush1.msra.mxu0 0.0
        %597 = vmatprep.subr.mxu0 0.0
        %598 = vmatpush1.msra.mxu0 0.0
        %599 = vmatprep.subr.mxu0 0.0
        %600 = vmatpush1.msra.mxu0 0.0
        %601 = vmatprep.subr.mxu0 0.0
        %602 = vmatpush1.msra.mxu0 0.0
        %603 = vmatprep.subr.mxu0 0.0
        %604 = vmatpush1.msra.mxu0 0.0
        %605 = vmatprep.subr.mxu0 0.0
        %606 = vmatpush1.msra.mxu0 0.0
        %607 = vmatprep.subr.mxu0 0.0
        %608 = vmatpush1.msra.mxu0 0.0
        %609 = vmatprep.subr.mxu0 0.0
        %610 = vmatpush1.msra.mxu0 0.0
        %611 = vmatprep.subr.mxu0 0.0
        %612 = vmatpush1.msra.mxu0 0.0
        %613 = vmatprep.subr.mxu0 0.0
        %614 = vmatpush1.msra.mxu0 0.0
        %615 = vmatprep.subr.mxu0 0.0
        %616 = vmatpush1.msra.mxu0 0.0
        %617 = vmatprep.subr.mxu0 0.0
        %618 = vmatpush1.msra.mxu0 0.0
        %619 = vmatprep.subr.mxu0 0.0
        %620 = vmatpush1.msra.mxu0 0.0
        %621 = vmatprep.subr.mxu0 0.0
        %622 = vmatpush1.msra.mxu0 0.0
        %623 = vmatprep.subr.mxu0 0.0
        %624 = vmatpush1.msra.mxu0 0.0
        %625 = vmatprep.mubr.f32.mxu0 0.0
        %626 = vmatmul.mubr.f32.gmra.mrb[0].mxu0 %v392
        %v627 = vpop.f32.mrb[0].mxu0
        %v628 = vadd.f32 0.0, %v627
        %v629 = vpop.f32.mrb[0].mxu0
        %630 = vmatprep.mubr.f32.mxu0 0.0
        %631 = vmatmul.mubr.f32.gmra.mrb[0].mxu0 %v395
        %v632 = vpop.f32.mrb[0].mxu0
        %v633 = vadd.f32 0.0, %v632
        %v634 = vpop.f32.mrb[0].mxu0
        %635 = vdwg.mxu0
        %vm636 = vcmask 64512
        %v638 = vsel %vm636, %v468, 0
        %v641 = vsel %vm636, %v473, 0
        %v644 = vsel %vm636, %v548, 0
        %v647 = vsel %vm636, %v553, 0
        %649 = vmatprep.subr.mxu0 0.0
        %650 = vmatpush1.xpose.msra.mxu0 %v644
        %651 = vmatprep.subr.mxu0 0.0
        %652 = vmatpush1.xpose.msra.mxu0 %v647
        %653 = vmatprep.subr.mxu0 0.0
        %654 = vmatpush1.xpose.msra.mxu0 0.0
        %655 = vmatprep.subr.mxu0 0.0
        %656 = vmatpush1.xpose.msra.mxu0 0.0
        %657 = vmatprep.subr.mxu0 0.0
        %658 = vmatpush1.xpose.msra.mxu0 0.0
        %659 = vmatprep.subr.mxu0 0.0
        %660 = vmatpush1.xpose.msra.mxu0 0.0
        %661 = vmatprep.subr.mxu0 0.0
        %662 = vmatpush1.xpose.msra.mxu0 0.0
        %663 = vmatprep.subr.mxu0 0.0
        %664 = vmatpush1.xpose.msra.mxu0 0.0
        %665 = vmatprep.subr.mxu0 0.0
        %666 = vmatpush1.xpose.msra.mxu0 0.0
        %667 = vmatprep.subr.mxu0 0.0
        %668 = vmatpush1.xpose.msra.mxu0 0.0
        %669 = vmatprep.subr.mxu0 0.0
        %670 = vmatpush1.xpose.msra.mxu0 0.0
        %671 = vmatprep.subr.mxu0 0.0
        %672 = vmatpush1.xpose.msra.mxu0 0.0
        %673 = vmatprep.subr.mxu0 0.0
        %674 = vmatpush1.xpose.msra.mxu0 0.0
        %675 = vmatprep.subr.mxu0 0.0
        %676 = vmatpush1.xpose.msra.mxu0 0.0
        %677 = vmatprep.subr.mxu0 0.0
        %678 = vmatpush1.xpose.msra.mxu0 0.0
        %679 = vmatprep.subr.mxu0 0.0
        %680 = vmatpush1.xpose.msra.mxu0 0.0
        %681 = vmatprep.subr.mxu0 0.0
        %682 = vmatpush1.xpose.msra.mxu0 0.0
        %683 = vmatprep.subr.mxu0 0.0
        %684 = vmatpush1.xpose.msra.mxu0 0.0
        %685 = vmatprep.subr.mxu0 0.0
        %686 = vmatpush1.xpose.msra.mxu0 0.0
        %687 = vmatprep.subr.mxu0 0.0
        %688 = vmatpush1.xpose.msra.mxu0 0.0
        %689 = vmatprep.subr.mxu0 0.0
        %690 = vmatpush1.xpose.msra.mxu0 0.0
        %691 = vmatprep.subr.mxu0 0.0
        %692 = vmatpush1.xpose.msra.mxu0 0.0
        %693 = vmatprep.subr.mxu0 0.0
        %694 = vmatpush1.xpose.msra.mxu0 0.0
        %695 = vmatprep.subr.mxu0 0.0
        %696 = vmatpush1.xpose.msra.mxu0 0.0
        %697 = vmatprep.subr.mxu0 0.0
        %698 = vmatpush1.xpose.msra.mxu0 0.0
        %699 = vmatprep.subr.mxu0 0.0
        %700 = vmatpush1.xpose.msra.mxu0 0.0
        %701 = vmatprep.subr.mxu0 0.0
        %702 = vmatpush1.xpose.msra.mxu0 0.0
        %703 = vmatprep.subr.mxu0 0.0
        %704 = vmatpush1.xpose.msra.mxu0 0.0
        %705 = vmatprep.subr.mxu0 0.0
        %706 = vmatpush1.xpose.msra.mxu0 0.0
        %707 = vmatprep.subr.mxu0 0.0
        %708 = vmatpush1.xpose.msra.mxu0 0.0
        %709 = vmatprep.subr.mxu0 0.0
        %710 = vmatpush1.xpose.msra.mxu0 0.0
        %711 = vmatprep.subr.mxu0 0.0
        %712 = vmatpush1.xpose.msra.mxu0 0.0
        %713 = vmatprep.mubr.f32.mxu0 0.0
        %714 = vmatmul.mubr.f32.gmra.mrb[0].mxu0 %v638
        %v715 = vpop.f32.mrb[0].mxu0
        %v716 = vadd.f32 0.0, %v715
        %v717 = vpop.f32.mrb[0].mxu0
        %718 = vmatprep.mubr.f32.mxu0 0.0
        %719 = vmatmul.mubr.f32.gmra.mrb[0].mxu0 %v641
        %v720 = vpop.f32.mrb[0].mxu0
        %v721 = vadd.f32 0.0, %v720
        %v722 = vpop.f32.mrb[0].mxu0
        %723 = vdwg.mxu0
        %v724 = vmul.f32 %v716, 0.5
        %v725 = vmul.f32 %v721, 0.5
        %vm726 = vcmask 130048
        %v727 = vsel %vm726, %v724, -inf
        %728 = vmax.xlane.f32.xlu0 %v727
        %v729 = vpop.xlane.xlu0 %728
        %v730 = vsel %vm726, %v725, -inf
        %731 = vmax.xlane.f32.xlu0 %v730
        %v732 = vpop.xlane.xlu0 %731
        %v733 = vsub.f32 %v724, %v729
        %v734 = vsub.f32 %v725, %v732
        %v735 = vmul.f32 %v733, 1.442695
        %v736 = vpow.pop %v735
        %v737 = vmul.f32 %v734, 1.442695
        %v738 = vpow.pop %v737
        %v739 = vsel %vm726, %v736, 0.0
        %740 = vadd.xlane.f32.xlu0 %v739
        %v741 = vpop.xlane.xlu0 %740
        %v742 = vsel %vm726, %v738, 0.0
        %743 = vadd.xlane.f32.xlu0 %v742
        %v744 = vpop.xlane.xlu0 %743
        %v745 = vrcp.pop %v741
        %v746 = vrcp.pop %v744
        %v747 = vmul.f32 %v736, %v745
        %v748 = vmul.f32 %v738, %v746
        %749 = vst.msk [vmem:[%s372] sm:$0xff] %vm726, %v747
        %750 = vst.msk [vmem:[%s372 + $0x8] sm:$0xff] %vm726, %v748
        %v752 = vsel %vm726, %v747, 0
        %v755 = vsel %vm726, %v748, 0
        %757 = vmatprep.subr.mxu0 0.0
        %758 = vmatpush1.msra.mxu0 %v628
        %759 = vmatprep.subr.mxu0 0.0
        %760 = vmatpush1.msra.mxu0 %v633
        %761 = vmatprep.subr.mxu0 0.0
        %762 = vmatpush1.msra.mxu0 0.0
        %763 = vmatprep.subr.mxu0 0.0
        %764 = vmatpush1.msra.mxu0 0.0
        %765 = vmatprep.subr.mxu0 0.0
        %766 = vmatpush1.msra.mxu0 0.0
        %767 = vmatprep.subr.mxu0 0.0
        %768 = vmatpush1.msra.mxu0 0.0
        %769 = vmatprep.subr.mxu0 0.0
        %770 = vmatpush1.msra.mxu0 0.0
        %771 = vmatprep.subr.mxu0 0.0
        %772 = vmatpush1.msra.mxu0 0.0
        %773 = vmatprep.subr.mxu0 0.0
        %774 = vmatpush1.msra.mxu0 0.0
        %775 = vmatprep.subr.mxu0 0.0
        %776 = vmatpush1.msra.mxu0 0.0
        %777 = vmatprep.subr.mxu0 0.0
        %778 = vmatpush1.msra.mxu0 0.0
        %779 = vmatprep.subr.mxu0 0.0
        %780 = vmatpush1.msra.mxu0 0.0
        %781 = vmatprep.subr.mxu0 0.0
        %782 = vmatpush1.msra.mxu0 0.0
        %783 = vmatprep.subr.mxu0 0.0
        %784 = vmatpush1.msra.mxu0 0.0
        %785 = vmatprep.subr.mxu0 0.0
        %786 = vmatpush1.msra.mxu0 0.0
        %787 = vmatprep.subr.mxu0 0.0
        %788 = vmatpush1.msra.mxu0 0.0
        %789 = vmatprep.subr.mxu0 0.0
        %790 = vmatpush1.msra.mxu0 0.0
        %791 = vmatprep.subr.mxu0 0.0
        %792 = vmatpush1.msra.mxu0 0.0
        %793 = vmatprep.subr.mxu0 0.0
        %794 = vmatpush1.msra.mxu0 0.0
        %795 = vmatprep.subr.mxu0 0.0
        %796 = vmatpush1.msra.mxu0 0.0
        %797 = vmatprep.subr.mxu0 0.0
        %798 = vmatpush1.msra.mxu0 0.0
        %799 = vmatprep.subr.mxu0 0.0
        %800 = vmatpush1.msra.mxu0 0.0
        %801 = vmatprep.subr.mxu0 0.0
        %802 = vmatpush1.msra.mxu0 0.0
        %803 = vmatprep.subr.mxu0 0.0
        %804 = vmatpush1.msra.mxu0 0.0
        %805 = vmatprep.subr.mxu0 0.0
        %806 = vmatpush1.msra.mxu0 0.0
        %807 = vmatprep.subr.mxu0 0.0
        %808 = vmatpush1.msra.mxu0 0.0
        %809 = vmatprep.subr.mxu0 0.0
        %810 = vmatpush1.msra.mxu0 0.0
        %811 = vmatprep.subr.mxu0 0.0
        %812 = vmatpush1.msra.mxu0 0.0
        %813 = vmatprep.subr.mxu0 0.0
        %814 = vmatpush1.msra.mxu0 0.0
        %815 = vmatprep.subr.mxu0 0.0
        %816 = vmatpush1.msra.mxu0 0.0
        %817 = vmatprep.subr.mxu0 0.0
        %818 = vmatpush1.msra.mxu0 0.0
        %819 = vmatprep.subr.mxu0 0.0
        %820 = vmatpush1.msra.mxu0 0.0
        %821 = vmatprep.mubr.f32.mxu0 0.0
        %822 = vmatmul.mubr.f32.gmra.mrb[0].mxu0 %v752
        %v823 = vpop.f32.mrb[0].mxu0
        %v824 = vadd.f32 0.0, %v823
        %v825 = vpop.f32.mrb[0].mxu0
        %826 = vmatprep.mubr.f32.mxu0 0.0
        %827 = vmatmul.mubr.f32.gmra.mrb[0].mxu0 %v755
        %v828 = vpop.f32.mrb[0].mxu0
        %v829 = vadd.f32 0.0, %v828
        %v830 = vpop.f32.mrb[0].mxu0
        %831 = vdwg.mxu0
        %v832 = vld [vmem:[%s5] sm:$0xf]
        %s833 = scalar_lea.vmem %s5, 8
        %v834 = vld [vmem:[%s833] sm:$0xf]
        %835 = vrot.lane.b32.xlu0 %v468, 120
        %v836 = vpop.permute.xlu0 %835
        %837 = vrot.lane.b32.xlu0 %v473, 120
        %v838 = vpop.permute.xlu0 %837
        %839 = vrot.lane.b32.xlu0 %v548, 120
        %v840 = vpop.permute.xlu0 %839
        %841 = vrot.lane.b32.xlu0 %v553, 120
        %v842 = vpop.permute.xlu0 %841
        %v843 = vsel %vm636, %v836, 0
        %v845 = vsel %vm636, %v838, 0
        %v847 = vsel %vm636, %v840, 0
        %v849 = vsel %vm636, %v842, 0
        %851 = vmatprep.subr.mxu0 0.0
        %852 = vmatpush1.xpose.msra.mxu0 %v847
        %853 = vmatprep.subr.mxu0 0.0
        %854 = vmatpush1.xpose.msra.mxu0 %v849
        %855 = vmatprep.subr.mxu0 0.0
        %856 = vmatpush1.xpose.msra.mxu0 0.0
        %857 = vmatprep.subr.mxu0 0.0
        %858 = vmatpush1.xpose.msra.mxu0 0.0
        %859 = vmatprep.subr.mxu0 0.0
        %860 = vmatpush1.xpose.msra.mxu0 0.0
        %861 = vmatprep.subr.mxu0 0.0
        %862 = vmatpush1.xpose.msra.mxu0 0.0
        %863 = vmatprep.subr.mxu0 0.0
        %864 = vmatpush1.xpose.msra.mxu0 0.0
        %865 = vmatprep.subr.mxu0 0.0
        %866 = vmatpush1.xpose.msra.mxu0 0.0
        %867 = vmatprep.subr.mxu0 0.0
        %868 = vmatpush1.xpose.msra.mxu0 0.0
        %869 = vmatprep.subr.mxu0 0.0
        %870 = vmatpush1.xpose.msra.mxu0 0.0
        %871 = vmatprep.subr.mxu0 0.0
        %872 = vmatpush1.xpose.msra.mxu0 0.0
        %873 = vmatprep.subr.mxu0 0.0
        %874 = vmatpush1.xpose.msra.mxu0 0.0
        %875 = vmatprep.subr.mxu0 0.0
        %876 = vmatpush1.xpose.msra.mxu0 0.0
        %877 = vmatprep.subr.mxu0 0.0
        %878 = vmatpush1.xpose.msra.mxu0 0.0
        %879 = vmatprep.subr.mxu0 0.0
        %880 = vmatpush1.xpose.msra.mxu0 0.0
        %881 = vmatprep.subr.mxu0 0.0
        %882 = vmatpush1.xpose.msra.mxu0 0.0
        %883 = vmatprep.subr.mxu0 0.0
        %884 = vmatpush1.xpose.msra.mxu0 0.0
        %885 = vmatprep.subr.mxu0 0.0
        %886 = vmatpush1.xpose.msra.mxu0 0.0
        %887 = vmatprep.subr.mxu0 0.0
        %888 = vmatpush1.xpose.msra.mxu0 0.0
        %889 = vmatprep.subr.mxu0 0.0
        %890 = vmatpush1.xpose.msra.mxu0 0.0
        %891 = vmatprep.subr.mxu0 0.0
        %892 = vmatpush1.xpose.msra.mxu0 0.0
        %893 = vmatprep.subr.mxu0 0.0
        %894 = vmatpush1.xpose.msra.mxu0 0.0
        %895 = vmatprep.subr.mxu0 0.0
        %896 = vmatpush1.xpose.msra.mxu0 0.0
        %897 = vmatprep.subr.mxu0 0.0
        %898 = vmatpush1.xpose.msra.mxu0 0.0
        %899 = vmatprep.subr.mxu0 0.0
        %900 = vmatpush1.xpose.msra.mxu0 0.0
        %901 = vmatprep.subr.mxu0 0.0
        %902 = vmatpush1.xpose.msra.mxu0 0.0
        %903 = vmatprep.subr.mxu0 0.0
        %904 = vmatpush1.xpose.msra.mxu0 0.0
        %905 = vmatprep.subr.mxu0 0.0
        %906 = vmatpush1.xpose.msra.mxu0 0.0
        %907 = vmatprep.subr.mxu0 0.0
        %908 = vmatpush1.xpose.msra.mxu0 0.0
        %909 = vmatprep.subr.mxu0 0.0
        %910 = vmatpush1.xpose.msra.mxu0 0.0
        %911 = vmatprep.subr.mxu0 0.0
        %912 = vmatpush1.xpose.msra.mxu0 0.0
        %913 = vmatprep.subr.mxu0 0.0
        %914 = vmatpush1.xpose.msra.mxu0 0.0
        %915 = vmatprep.mubr.f32.mxu0 0.0
        %916 = vmatmul.mubr.f32.gmra.mrb[0].mxu0 %v843
        %v917 = vpop.f32.mrb[0].mxu0
        %v918 = vadd.f32 0.0, %v917
        %v919 = vpop.f32.mrb[0].mxu0
        %920 = vmatprep.mubr.f32.mxu0 0.0
        %921 = vmatmul.mubr.f32.gmra.mrb[0].mxu0 %v845
        %v922 = vpop.f32.mrb[0].mxu0
        %v923 = vadd.f32 0.0, %v922
        %v924 = vpop.f32.mrb[0].mxu0
        %925 = vdwg.mxu0
        %v926 = vmul.f32 %v918, 0.5
        %v927 = vmul.f32 %v923, 0.5
        %v928 = vsel %vm726, %v926, -inf
        %929 = vmax.xlane.f32.xlu0 %v928
        %v930 = vpop.xlane.xlu0 %929
        %v931 = vsel %vm726, %v927, -inf
        %932 = vmax.xlane.f32.xlu0 %v931
        %v933 = vpop.xlane.xlu0 %932
        %v934 = vsub.f32 %v926, %v930
        %v935 = vsub.f32 %v927, %v933
        %v936 = vmul.f32 %v934, 1.442695
        %v937 = vpow.pop %v936
        %v938 = vmul.f32 %v935, 1.442695
        %v939 = vpow.pop %v938
        %v940 = vsel %vm726, %v937, 0.0
        %941 = vadd.xlane.f32.xlu0 %v940
        %v942 = vpop.xlane.xlu0 %941
        %v943 = vsel %vm726, %v939, 0.0
        %944 = vadd.xlane.f32.xlu0 %v943
        %v945 = vpop.xlane.xlu0 %944
        %v946 = vrcp.pop %v942
        %v947 = vrcp.pop %v945
        %v948 = vmul.f32 %v937, %v946
        %v949 = vmul.f32 %v939, %v947
        %s950 = scalar_lea.vmem %s372, 16 [#allocation2]
        %951 = vst.msk [vmem:[%s950] sm:$0xff] %vm726, %v948
        %952 = vst.msk [vmem:[%s950 + $0x8] sm:$0xff] %vm726, %v949
        %955 = vrot.lane.b32.xlu0 %v628, 120
        %v956 = vpop.permute.xlu0 %955
        %957 = vrot.lane.b32.xlu0 %v633, 120
        %v958 = vpop.permute.xlu0 %957
        %v962 = vsel %vm726, %v948, 0
        %v965 = vsel %vm726, %v949, 0
        %967 = vmatprep.subr.mxu0 0.0
        %968 = vmatpush1.msra.mxu0 %v956
        %969 = vmatprep.subr.mxu0 0.0
        %970 = vmatpush1.msra.mxu0 %v958
        %971 = vmatprep.subr.mxu0 0.0
        %972 = vmatpush1.msra.mxu0 0.0
        %973 = vmatprep.subr.mxu0 0.0
        %974 = vmatpush1.msra.mxu0 0.0
        %975 = vmatprep.subr.mxu0 0.0
        %976 = vmatpush1.msra.mxu0 0.0
        %977 = vmatprep.subr.mxu0 0.0
        %978 = vmatpush1.msra.mxu0 0.0
        %979 = vmatprep.subr.mxu0 0.0
        %980 = vmatpush1.msra.mxu0 0.0
        %981 = vmatprep.subr.mxu0 0.0
        %982 = vmatpush1.msra.mxu0 0.0
        %983 = vmatprep.subr.mxu0 0.0
        %984 = vmatpush1.msra.mxu0 0.0
        %985 = vmatprep.subr.mxu0 0.0
        %986 = vmatpush1.msra.mxu0 0.0
        %987 = vmatprep.subr.mxu0 0.0
        %988 = vmatpush1.msra.mxu0 0.0
        %989 = vmatprep.subr.mxu0 0.0
        %990 = vmatpush1.msra.mxu0 0.0
        %991 = vmatprep.subr.mxu0 0.0
        %992 = vmatpush1.msra.mxu0 0.0
        %993 = vmatprep.subr.mxu0 0.0
        %994 = vmatpush1.msra.mxu0 0.0
        %995 = vmatprep.subr.mxu0 0.0
        %996 = vmatpush1.msra.mxu0 0.0
        %997 = vmatprep.subr.mxu0 0.0
        %998 = vmatpush1.msra.mxu0 0.0
        %999 = vmatprep.subr.mxu0 0.0
        %1000 = vmatpush1.msra.mxu0 0.0
        %1001 = vmatprep.subr.mxu0 0.0
        %1002 = vmatpush1.msra.mxu0 0.0
        %1003 = vmatprep.subr.mxu0 0.0
        %1004 = vmatpush1.msra.mxu0 0.0
        %1005 = vmatprep.subr.mxu0 0.0
        %1006 = vmatpush1.msra.mxu0 0.0
        %1007 = vmatprep.subr.mxu0 0.0
        %1008 = vmatpush1.msra.mxu0 0.0
        %1009 = vmatprep.subr.mxu0 0.0
        %1010 = vmatpush1.msra.mxu0 0.0
        %1011 = vmatprep.subr.mxu0 0.0
        %1012 = vmatpush1.msra.mxu0 0.0
        %1013 = vmatprep.subr.mxu0 0.0
        %1014 = vmatpush1.msra.mxu0 0.0
        %1015 = vmatprep.subr.mxu0 0.0
        %1016 = vmatpush1.msra.mxu0 0.0
        %1017 = vmatprep.subr.mxu0 0.0
        %1018 = vmatpush1.msra.mxu0 0.0
        %1019 = vmatprep.subr.mxu0 0.0
        %1020 = vmatpush1.msra.mxu0 0.0
        %1021 = vmatprep.subr.mxu0 0.0
        %1022 = vmatpush1.msra.mxu0 0.0
        %1023 = vmatprep.subr.mxu0 0.0
        %1024 = vmatpush1.msra.mxu0 0.0
        %1025 = vmatprep.subr.mxu0 0.0
        %1026 = vmatpush1.msra.mxu0 0.0
        %1027 = vmatprep.subr.mxu0 0.0
        %1028 = vmatpush1.msra.mxu0 0.0
        %1029 = vmatprep.subr.mxu0 0.0
        %1030 = vmatpush1.msra.mxu0 0.0
        %1031 = vmatprep.mubr.f32.mxu0 0.0
        %1032 = vmatmul.mubr.f32.gmra.mrb[0].mxu0 %v962
        %v1033 = vpop.f32.mrb[0].mxu0
        %v1034 = vadd.f32 0.0, %v1033
        %v1035 = vpop.f32.mrb[0].mxu0
        %1036 = vmatprep.mubr.f32.mxu0 0.0
        %1037 = vmatmul.mubr.f32.gmra.mrb[0].mxu0 %v965
        %v1038 = vpop.f32.mrb[0].mxu0
        %v1039 = vadd.f32 0.0, %v1038
        %v1040 = vpop.f32.mrb[0].mxu0
        %1041 = vdwg.mxu0
        %s1042 = scalar_lea.vmem %s5, 4
        %v1043 = vld [vmem:[%s1042] sm:$0xf]
        %v1045 = vsel %vm726, %v1043, 0
        %1047 = vmatprep.subr.mxu0 0.0
        %1048 = vmatpush1.msra.mxu0 %v1034
        %1049 = vmatprep.subr.mxu0 0.0
        %1050 = vmatpush1.msra.mxu0 %v1039
        %1051 = vmatprep.subr.mxu0 0.0
        %1052 = vmatpush1.msra.mxu0 0.0
        %1053 = vmatprep.subr.mxu0 0.0
        %1054 = vmatpush1.msra.mxu0 0.0
        %1055 = vmatprep.subr.mxu0 0.0
        %1056 = vmatpush1.msra.mxu0 0.0
        %1057 = vmatprep.subr.mxu0 0.0
        %1058 = vmatpush1.msra.mxu0 0.0
        %1059 = vmatprep.subr.mxu0 0.0
        %1060 = vmatpush1.msra.mxu0 0.0
        %1061 = vmatprep.subr.mxu0 0.0
        %1062 = vmatpush1.msra.mxu0 0.0
        %1063 = vmatprep.subr.mxu0 0.0
        %1064 = vmatpush1.msra.mxu0 0.0
        %1065 = vmatprep.subr.mxu0 0.0
        %1066 = vmatpush1.msra.mxu0 0.0
        %1067 = vmatprep.subr.mxu0 0.0
        %1068 = vmatpush1.msra.mxu0 0.0
        %1069 = vmatprep.subr.mxu0 0.0
        %1070 = vmatpush1.msra.mxu0 0.0
        %1071 = vmatprep.subr.mxu0 0.0
        %1072 = vmatpush1.msra.mxu0 0.0
        %1073 = vmatprep.subr.mxu0 0.0
        %1074 = vmatpush1.msra.mxu0 0.0
        %1075 = vmatprep.subr.mxu0 0.0
        %1076 = vmatpush1.msra.mxu0 0.0
        %1077 = vmatprep.subr.mxu0 0.0
        %1078 = vmatpush1.msra.mxu0 0.0
        %1079 = vmatprep.subr.mxu0 0.0
        %1080 = vmatpush1.msra.mxu0 0.0
        %1081 = vmatprep.subr.mxu0 0.0
        %1082 = vmatpush1.msra.mxu0 0.0
        %1083 = vmatprep.subr.mxu0 0.0
        %1084 = vmatpush1.msra.mxu0 0.0
        %1085 = vmatprep.subr.mxu0 0.0
        %1086 = vmatpush1.msra.mxu0 0.0
        %1087 = vmatprep.subr.mxu0 0.0
        %1088 = vmatpush1.msra.mxu0 0.0
        %1089 = vmatprep.subr.mxu0 0.0
        %1090 = vmatpush1.msra.mxu0 0.0
        %1091 = vmatprep.subr.mxu0 0.0
        %1092 = vmatpush1.msra.mxu0 0.0
        %1093 = vmatprep.subr.mxu0 0.0
        %1094 = vmatpush1.msra.mxu0 0.0
        %1095 = vmatprep.subr.mxu0 0.0
        %1096 = vmatpush1.msra.mxu0 0.0
        %1097 = vmatprep.subr.mxu0 0.0
        %1098 = vmatpush1.msra.mxu0 0.0
        %1099 = vmatprep.subr.mxu0 0.0
        %1100 = vmatpush1.msra.mxu0 0.0
        %1101 = vmatprep.subr.mxu0 0.0
        %1102 = vmatpush1.msra.mxu0 0.0
        %1103 = vmatprep.subr.mxu0 0.0
        %1104 = vmatpush1.msra.mxu0 0.0
        %1105 = vmatprep.subr.mxu0 0.0
        %1106 = vmatpush1.msra.mxu0 0.0
        %1107 = vmatprep.subr.mxu0 0.0
        %1108 = vmatpush1.msra.mxu0 0.0
        %1109 = vmatprep.subr.mxu0 0.0
        %1110 = vmatpush1.msra.mxu0 0.0
        %1111 = vmatprep.mubr.f32.mxu0 0.0
        %1112 = vmatmul.mubr.f32.gmra.mrb[0].mxu0 %v1045
        %v1113 = vpop.f32.mrb[0].mxu0
        %v1114 = vadd.f32 0.0, %v1113
        %v1115 = vpop.f32.mrb[0].mxu0
        %1116 = vdwg.mxu0
        %v1118 = vsel %vm726, %v832, 0
        %1120 = vmatprep.subr.mxu0 0.0
        %1121 = vmatpush1.msra.mxu0 %v824
        %1122 = vmatprep.subr.mxu0 0.0
        %1123 = vmatpush1.msra.mxu0 %v829
        %1124 = vmatprep.subr.mxu0 0.0
        %1125 = vmatpush1.msra.mxu0 0.0
        %1126 = vmatprep.subr.mxu0 0.0
        %1127 = vmatpush1.msra.mxu0 0.0
        %1128 = vmatprep.subr.mxu0 0.0
        %1129 = vmatpush1.msra.mxu0 0.0
        %1130 = vmatprep.subr.mxu0 0.0
        %1131 = vmatpush1.msra.mxu0 0.0
        %1132 = vmatprep.subr.mxu0 0.0
        %1133 = vmatpush1.msra.mxu0 0.0
        %1134 = vmatprep.subr.mxu0 0.0
        %1135 = vmatpush1.msra.mxu0 0.0
        %1136 = vmatprep.subr.mxu0 0.0
        %1137 = vmatpush1.msra.mxu0 0.0
        %1138 = vmatprep.subr.mxu0 0.0
        %1139 = vmatpush1.msra.mxu0 0.0
        %1140 = vmatprep.subr.mxu0 0.0
        %1141 = vmatpush1.msra.mxu0 0.0
        %1142 = vmatprep.subr.mxu0 0.0
        %1143 = vmatpush1.msra.mxu0 0.0
        %1144 = vmatprep.subr.mxu0 0.0
        %1145 = vmatpush1.msra.mxu0 0.0
        %1146 = vmatprep.subr.mxu0 0.0
        %1147 = vmatpush1.msra.mxu0 0.0
        %1148 = vmatprep.subr.mxu0 0.0
        %1149 = vmatpush1.msra.mxu0 0.0
        %1150 = vmatprep.subr.mxu0 0.0
        %1151 = vmatpush1.msra.mxu0 0.0
        %1152 = vmatprep.subr.mxu0 0.0
        %1153 = vmatpush1.msra.mxu0 0.0
        %1154 = vmatprep.subr.mxu0 0.0
        %1155 = vmatpush1.msra.mxu0 0.0
        %1156 = vmatprep.subr.mxu0 0.0
        %1157 = vmatpush1.msra.mxu0 0.0
        %1158 = vmatprep.subr.mxu0 0.0
        %1159 = vmatpush1.msra.mxu0 0.0
        %1160 = vmatprep.subr.mxu0 0.0
        %1161 = vmatpush1.msra.mxu0 0.0
        %1162 = vmatprep.subr.mxu0 0.0
        %1163 = vmatpush1.msra.mxu0 0.0
        %1164 = vmatprep.subr.mxu0 0.0
        %1165 = vmatpush1.msra.mxu0 0.0
        %1166 = vmatprep.subr.mxu0 0.0
        %1167 = vmatpush1.msra.mxu0 0.0
        %1168 = vmatprep.subr.mxu0 0.0
        %1169 = vmatpush1.msra.mxu0 0.0
        %1170 = vmatprep.subr.mxu0 0.0
        %1171 = vmatpush1.msra.mxu0 0.0
        %1172 = vmatprep.subr.mxu0 0.0
        %1173 = vmatpush1.msra.mxu0 0.0
        %1174 = vmatprep.subr.mxu0 0.0
        %1175 = vmatpush1.msra.mxu0 0.0
        %1176 = vmatprep.subr.mxu0 0.0
        %1177 = vmatpush1.msra.mxu0 0.0
        %1178 = vmatprep.subr.mxu0 0.0
        %1179 = vmatpush1.msra.mxu0 0.0
        %1180 = vmatprep.subr.mxu0 0.0
        %1181 = vmatpush1.msra.mxu0 0.0
        %1182 = vmatprep.subr.mxu0 0.0
        %1183 = vmatpush1.msra.mxu0 0.0
        %1184 = vmatprep.mubr.f32.mxu0 0.0
        %1185 = vmatmul.mubr.f32.gmra.mrb[0].mxu0 %v1118
        %v1186 = vpop.f32.mrb[0].mxu0
        %v1187 = vadd.f32 %v1114, %v1186
        %v1188 = vpop.f32.mrb[0].mxu0
        %1189 = vdwg.mxu0
        %s1190 = scalar_lea.vmem %s5, 12
        %v1191 = vld [vmem:[%s1190] sm:$0xf]
        %v1193 = vsel %vm726, %v1191, 0
        %1195 = vmatprep.subr.mxu0 0.0
        %1196 = vmatpush1.msra.mxu0 %v1034
        %1197 = vmatprep.subr.mxu0 0.0
        %1198 = vmatpush1.msra.mxu0 %v1039
        %1199 = vmatprep.subr.mxu0 0.0
        %1200 = vmatpush1.msra.mxu0 0.0
        %1201 = vmatprep.subr.mxu0 0.0
        %1202 = vmatpush1.msra.mxu0 0.0
        %1203 = vmatprep.subr.mxu0 0.0
        %1204 = vmatpush1.msra.mxu0 0.0
        %1205 = vmatprep.subr.mxu0 0.0
        %1206 = vmatpush1.msra.mxu0 0.0
        %1207 = vmatprep.subr.mxu0 0.0
        %1208 = vmatpush1.msra.mxu0 0.0
        %1209 = vmatprep.subr.mxu0 0.0
        %1210 = vmatpush1.msra.mxu0 0.0
        %1211 = vmatprep.subr.mxu0 0.0
        %1212 = vmatpush1.msra.mxu0 0.0
        %1213 = vmatprep.subr.mxu0 0.0
        %1214 = vmatpush1.msra.mxu0 0.0
        %1215 = vmatprep.subr.mxu0 0.0
        %1216 = vmatpush1.msra.mxu0 0.0
        %1217 = vmatprep.subr.mxu0 0.0
        %1218 = vmatpush1.msra.mxu0 0.0
        %1219 = vmatprep.subr.mxu0 0.0
        %1220 = vmatpush1.msra.mxu0 0.0
        %1221 = vmatprep.subr.mxu0 0.0
        %1222 = vmatpush1.msra.mxu0 0.0
        %1223 = vmatprep.subr.mxu0 0.0
        %1224 = vmatpush1.msra.mxu0 0.0
        %1225 = vmatprep.subr.mxu0 0.0
        %1226 = vmatpush1.msra.mxu0 0.0
        %1227 = vmatprep.subr.mxu0 0.0
        %1228 = vmatpush1.msra.mxu0 0.0
        %1229 = vmatprep.subr.mxu0 0.0
        %1230 = vmatpush1.msra.mxu0 0.0
        %1231 = vmatprep.subr.mxu0 0.0
        %1232 = vmatpush1.msra.mxu0 0.0
        %1233 = vmatprep.subr.mxu0 0.0
        %1234 = vmatpush1.msra.mxu0 0.0
        %1235 = vmatprep.subr.mxu0 0.0
        %1236 = vmatpush1.msra.mxu0 0.0
        %1237 = vmatprep.subr.mxu0 0.0
        %1238 = vmatpush1.msra.mxu0 0.0
        %1239 = vmatprep.subr.mxu0 0.0
        %1240 = vmatpush1.msra.mxu0 0.0
        %1241 = vmatprep.subr.mxu0 0.0
        %1242 = vmatpush1.msra.mxu0 0.0
        %1243 = vmatprep.subr.mxu0 0.0
        %1244 = vmatpush1.msra.mxu0 0.0
        %1245 = vmatprep.subr.mxu0 0.0
        %1246 = vmatpush1.msra.mxu0 0.0
        %1247 = vmatprep.subr.mxu0 0.0
        %1248 = vmatpush1.msra.mxu0 0.0
        %1249 = vmatprep.subr.mxu0 0.0
        %1250 = vmatpush1.msra.mxu0 0.0
        %1251 = vmatprep.subr.mxu0 0.0
        %1252 = vmatpush1.msra.mxu0 0.0
        %1253 = vmatprep.subr.mxu0 0.0
        %1254 = vmatpush1.msra.mxu0 0.0
        %1255 = vmatprep.subr.mxu0 0.0
        %1256 = vmatpush1.msra.mxu0 0.0
        %1257 = vmatprep.subr.mxu0 0.0
        %1258 = vmatpush1.msra.mxu0 0.0
        %1259 = vmatprep.mubr.f32.mxu0 0.0
        %1260 = vmatmul.mubr.f32.gmra.mrb[0].mxu0 %v1193
        %v1261 = vpop.f32.mrb[0].mxu0
        %v1262 = vadd.f32 0.0, %v1261
        %v1263 = vpop.f32.mrb[0].mxu0
        %1264 = vdwg.mxu0
        %v1266 = vsel %vm726, %v834, 0
        %1268 = vmatprep.subr.mxu0 0.0
        %1269 = vmatpush1.msra.mxu0 %v824
        %1270 = vmatprep.subr.mxu0 0.0
        %1271 = vmatpush1.msra.mxu0 %v829
        %1272 = vmatprep.subr.mxu0 0.0
        %1273 = vmatpush1.msra.mxu0 0.0
        %1274 = vmatprep.subr.mxu0 0.0
        %1275 = vmatpush1.msra.mxu0 0.0
        %1276 = vmatprep.subr.mxu0 0.0
        %1277 = vmatpush1.msra.mxu0 0.0
        %1278 = vmatprep.subr.mxu0 0.0
        %1279 = vmatpush1.msra.mxu0 0.0
        %1280 = vmatprep.subr.mxu0 0.0
        %1281 = vmatpush1.msra.mxu0 0.0
        %1282 = vmatprep.subr.mxu0 0.0
        %1283 = vmatpush1.msra.mxu0 0.0
        %1284 = vmatprep.subr.mxu0 0.0
        %1285 = vmatpush1.msra.mxu0 0.0
        %1286 = vmatprep.subr.mxu0 0.0
        %1287 = vmatpush1.msra.mxu0 0.0
        %1288 = vmatprep.subr.mxu0 0.0
        %1289 = vmatpush1.msra.mxu0 0.0
        %1290 = vmatprep.subr.mxu0 0.0
        %1291 = vmatpush1.msra.mxu0 0.0
        %1292 = vmatprep.subr.mxu0 0.0
        %1293 = vmatpush1.msra.mxu0 0.0
        %1294 = vmatprep.subr.mxu0 0.0
        %1295 = vmatpush1.msra.mxu0 0.0
        %1296 = vmatprep.subr.mxu0 0.0
        %1297 = vmatpush1.msra.mxu0 0.0
        %1298 = vmatprep.subr.mxu0 0.0
        %1299 = vmatpush1.msra.mxu0 0.0
        %1300 = vmatprep.subr.mxu0 0.0
        %1301 = vmatpush1.msra.mxu0 0.0
        %1302 = vmatprep.subr.mxu0 0.0
        %1303 = vmatpush1.msra.mxu0 0.0
        %1304 = vmatprep.subr.mxu0 0.0
        %1305 = vmatpush1.msra.mxu0 0.0
        %1306 = vmatprep.subr.mxu0 0.0
        %1307 = vmatpush1.msra.mxu0 0.0
        %1308 = vmatprep.subr.mxu0 0.0
        %1309 = vmatpush1.msra.mxu0 0.0
        %1310 = vmatprep.subr.mxu0 0.0
        %1311 = vmatpush1.msra.mxu0 0.0
        %1312 = vmatprep.subr.mxu0 0.0
        %1313 = vmatpush1.msra.mxu0 0.0
        %1314 = vmatprep.subr.mxu0 0.0
        %1315 = vmatpush1.msra.mxu0 0.0
        %1316 = vmatprep.subr.mxu0 0.0
        %1317 = vmatpush1.msra.mxu0 0.0
        %1318 = vmatprep.subr.mxu0 0.0
        %1319 = vmatpush1.msra.mxu0 0.0
        %1320 = vmatprep.subr.mxu0 0.0
        %1321 = vmatpush1.msra.mxu0 0.0
        %1322 = vmatprep.subr.mxu0 0.0
        %1323 = vmatpush1.msra.mxu0 0.0
        %1324 = vmatprep.subr.mxu0 0.0
        %1325 = vmatpush1.msra.mxu0 0.0
        %1326 = vmatprep.subr.mxu0 0.0
        %1327 = vmatpush1.msra.mxu0 0.0
        %1328 = vmatprep.subr.mxu0 0.0
        %1329 = vmatpush1.msra.mxu0 0.0
        %1330 = vmatprep.subr.mxu0 0.0
        %1331 = vmatpush1.msra.mxu0 0.0
        %1332 = vmatprep.mubr.f32.mxu0 0.0
        %1333 = vmatmul.mubr.f32.gmra.mrb[0].mxu0 %v1266
        %v1334 = vpop.f32.mrb[0].mxu0
        %v1335 = vadd.f32 %v1262, %v1334
        %v1336 = vpop.f32.mrb[0].mxu0
        %1337 = vdwg.mxu0
        %1339 = vrot.lane.b32.xlu0 %v1335, 8
        %v1340 = vpop.permute.xlu0 %1339
        %v1342 = vsel %vm636, %v1187, %v1340
        %vm1343 = vcmask 125952
        %v1344 = vsel %vm1343, %v1342, 0.0
        %v1345 = vrot.slane %v1344, 4
        %v1346 = vadd.f32 %v1344, %v1345
        %v1347 = vrot.slane %v1346, 2
        %v1348 = vadd.f32 %v1346, %v1347
        %v1349 = vrot.slane %v1348, 1
        %v1350 = vadd.f32 %v1348, %v1349
        %v1351 = vrcp.pop 4.0
        %v1352 = vmul.f32 %v1350, %v1351
        %v1353 = vsel %vm1343, %v1342, -inf
        %v1354 = vrot.slane %v1353, 4
        %v1355 = vmax.f32 %v1353, %v1354
        %v1356 = vrot.slane %v1355, 2
        %v1357 = vmax.f32 %v1355, %v1356
        %v1358 = vrot.slane %v1357, 1
        %v1359 = vmax.f32 %v1357, %v1358
        %v1360 = vld [vmem:[%s6] sm:$0x1]
        %vm1361 = vcmask 31744
        %v1363 = vsel %vm1361, %v1360, 0
        %v1366 = vsel %vm397, %v1342, 0
        %1368 = vmatprep.subr.mxu0 0.0
        %1369 = vmatpush1.msra.mxu0 %v1366
        %1370 = vmatprep.subr.mxu0 0.0
        %1371 = vmatpush1.msra.mxu0 0.0
        %1372 = vmatprep.subr.mxu0 0.0
        %1373 = vmatpush1.msra.mxu0 0.0
        %1374 = vmatprep.subr.mxu0 0.0
        %1375 = vmatpush1.msra.mxu0 0.0
        %1376 = vmatprep.subr.mxu0 0.0
        %1377 = vmatpush1.msra.mxu0 0.0
        %1378 = vmatprep.subr.mxu0 0.0
        %1379 = vmatpush1.msra.mxu0 0.0
        %1380 = vmatprep.subr.mxu0 0.0
        %1381 = vmatpush1.msra.mxu0 0.0
        %1382 = vmatprep.subr.mxu0 0.0
        %1383 = vmatpush1.msra.mxu0 0.0
        %1384 = vmatprep.subr.mxu0 0.0
        %1385 = vmatpush1.msra.mxu0 0.0
        %1386 = vmatprep.subr.mxu0 0.0
        %1387 = vmatpush1.msra.mxu0 0.0
        %1388 = vmatprep.subr.mxu0 0.0
        %1389 = vmatpush1.msra.mxu0 0.0
        %1390 = vmatprep.subr.mxu0 0.0
        %1391 = vmatpush1.msra.mxu0 0.0
        %1392 = vmatprep.subr.mxu0 0.0
        %1393 = vmatpush1.msra.mxu0 0.0
        %1394 = vmatprep.subr.mxu0 0.0
        %1395 = vmatpush1.msra.mxu0 0.0
        %1396 = vmatprep.subr.mxu0 0.0
        %1397 = vmatpush1.msra.mxu0 0.0
        %1398 = vmatprep.subr.mxu0 0.0
        %1399 = vmatpush1.msra.mxu0 0.0
        %1400 = vmatprep.subr.mxu0 0.0
        %1401 = vmatpush1.msra.mxu0 0.0
        %1402 = vmatprep.subr.mxu0 0.0
        %1403 = vmatpush1.msra.mxu0 0.0
        %1404 = vmatprep.subr.mxu0 0.0
        %1405 = vmatpush1.msra.mxu0 0.0
        %1406 = vmatprep.subr.mxu0 0.0
        %1407 = vmatpush1.msra.mxu0 0.0
        %1408 = vmatprep.subr.mxu0 0.0
        %1409 = vmatpush1.msra.mxu0 0.0
        %1410 = vmatprep.subr.mxu0 0.0
        %1411 = vmatpush1.msra.mxu0 0.0
        %1412 = vmatprep.subr.mxu0 0.0
        %1413 = vmatpush1.msra.mxu0 0.0
        %1414 = vmatprep.subr.mxu0 0.0
        %1415 = vmatpush1.msra.mxu0 0.0
        %1416 = vmatprep.subr.mxu0 0.0
        %1417 = vmatpush1.msra.mxu0 0.0
        %1418 = vmatprep.subr.mxu0 0.0
        %1419 = vmatpush1.msra.mxu0 0.0
        %1420 = vmatprep.subr.mxu0 0.0
        %1421 = vmatpush1.msra.mxu0 0.0
        %1422 = vmatprep.subr.mxu0 0.0
        %1423 = vmatpush1.msra.mxu0 0.0
        %1424 = vmatprep.subr.mxu0 0.0
        %1425 = vmatpush1.msra.mxu0 0.0
        %1426 = vmatprep.subr.mxu0 0.0
        %1427 = vmatpush1.msra.mxu0 0.0
        %1428 = vmatprep.subr.mxu0 0.0
        %1429 = vmatpush1.msra.mxu0 0.0
        %1430 = vmatprep.subr.mxu0 0.0
        %1431 = vmatpush1.msra.mxu0 0.0
        %1432 = vmatprep.mubr.f32.mxu0 0.0
        %1433 = vmatmul.mubr.f32.gmra.mrb[0].mxu0 %v1363
        %v1434 = vpop.f32.mrb[0].mxu0
        %v1435 = vadd.f32 0.0, %v1434
        %v1436 = vpop.f32.mrb[0].mxu0
        %1437 = vdwg.mxu0
        %vm1438 = vcmask 1040384
        %v1439 = vsel %vm1438, %v1435, %v1352
        %vm1440 = vcmask 1041408
        %v1441 = vsel %vm1440, %v1439, %v1359
        %v1442 = vld [vmem:[%s381] sm:$0x7]
        %v1443 = vadd.f32 %v1441, %v1442
        %vm1444 = vcmask 124928
        %v1445 = vsel %vm1444, %v1443, 0.0
        %1446 = vadd.xlane.f32.xlu0 %v1445
        %v1447 = vpop.xlane.xlu0 %1446
        %v1448 = vrcp.pop 16.0
        %v1449 = vmul.f32 %v1447, %v1448
        %v1450 = vsub.f32 %v1443, %v1449
        %v1451 = vmul.f32 %v1450, %v1450
        %v1452 = vsel %vm1444, %v1451, 0.0
        %1453 = vadd.xlane.f32.xlu0 %v1452
        %v1454 = vpop.xlane.xlu0 %1453
        %v1455 = vmul.f32 %v1454, %v1448
        %v1456 = vadd.f32 %v1455, 1e-05
        %v1457 = vrsqrt.pop %v1456
        %v1458 = vmul.f32 %v1450, %v1457
        %v1459 = vld [vmem:[%s7] sm:$0x1]
        %v1461 = vlaneseq
        %v1462 = vshrl.u32 %v1461, 7
        %v1463 = vsub.s32 0, %v1462
        %v1464 = vrot.slane %v1459, %v1463
        %v1466 = vmul.f32 %v1458, %v1464
        %v1467 = vld [vmem:[%s8] sm:$0x1]
        %v1469 = vlaneseq
        %v1470 = vshrl.u32 %v1469, 7
        %v1471 = vsub.s32 0, %v1470
        %v1472 = vrot.slane %v1467, %v1471
        %v1474 = vadd.f32 %v1466, %v1472
        %1475 = vst.msk [vmem:[%s385] sm:$0x7] %vm1444, %v1474
        %p1476 = scmp.lt.s32.totalorder %s25, 1
        %s1477 = scalar_select %p1476, %s25, 1
        %s1478 = smul.addr %s1477, 4
        %s1479 = scalar_lea.vmem %s9, %s1478
        %s1480 = sand.u32 %s258, 1
        %s1481 = scalar_lea.sflag [#allocation3], %s1480
        %s1482 = sand.u32 %s258, 1
        %s1483 = smul.addr %s1482, 32
        %s1484 = scalar_lea.vmem [#allocation2], %s1483
        // Predicated region
        $region57: #{shuffle_self_attention_layer_v2.1} parent=55 // pred_check
          %p1485 = pneg %p242
        $region58: #{shuffle_self_attention_layer_v2.1} parent=55 // pred_check_branch
          %1487 = sbr.rel (%p1485) target = $region60
        $region59: #{shuffle_self_attention_layer_v2.1} parent=55 // pred_region
          _
        $region60: #{shuffle_self_attention_layer_v2.1} parent=55 // pred_fallthru
          _
        // Predicated region
        $region61: #{shuffle_self_attention_layer_v2.1} parent=55 // pred_check
          %p1488 = pneg %p268
        $region62: #{shuffle_self_attention_layer_v2.1} parent=55 // pred_check_branch
          %1490 = sbr.rel (%p1488) target = $region64
        $region63: #{shuffle_self_attention_layer_v2.1} parent=55 // pred_region
          #allocation5 [shape = 'u32[6]{0}', space=smem, size = 0x18, scoped, tag = 'DMA stride descriptor']
          %s1492 = ssub.s32 512, 512
          %1493 = vsyncadd %s1481, %s1492
          %s1494 = smul.addr %s25, 2
          %s1495 = smul.addr %s1494, 128
          %s1496 = scalar_lea.hbm %s10, %s1495
          %s1498 = sshll.u32 1, 14
          %s1499 = sxor.u32 4294967295, %s1498
          %s1502 = sshll.u32 7, 18
          %s1503 = sxor.u32 4294967295, %s1502
          %s1504 = sand.u32 0, %s1503
          %s1506 = sor.u32 %s1504, 0
          %s1508 = sshll.u32 3, 24
          %s1509 = sxor.u32 4294967295, %s1508
          %s1510 = sand.u32 %s1506, %s1509
          %s1512 = sor.u32 %s1510, 0
          %s1513 = sshll.u32 %s1484, 4
          %s1514 = int_to_ptr.vmem [resolvable:$true] %s1513
          %1520 = sst [smem:[#allocation5]] 256
          %s1521 = scalar_lea.smem [#allocation5], 1
          %1522 = sst [smem:[%s1521]] 512
          %s1523 = scalar_lea.smem [#allocation5], 2
          %1524 = sst [smem:[%s1523]] 2
          %s1525 = scalar_lea.smem [#allocation5], 3
          %1526 = sst [smem:[%s1525]] 128
          %s1527 = scalar_lea.smem [#allocation5], 4
          %1528 = sst [smem:[%s1527]] 128
          %s1529 = scalar_lea.smem [#allocation5], 5
          %1530 = sst [smem:[%s1529]] 8
          %1532 = dma.general %s1514, 512, %s1496, %s1481, [#allocation4], [#allocation5], %s1512, 0
        $region64: #{shuffle_self_attention_layer_v2.1} parent=55 // pred_fallthru
          _
      $region56: #{shuffle_self_attention_layer_v2.1} parent=5 // pred_fallthru
        _
      %p1533 = scmp.le.s32.totalorder 2, %s20
      // Predicated region
      $region65: #{shuffle_self_attention_layer_v2.1} parent=5 // pred_check
        %p1534 = pneg %p1533
      $region66: #{shuffle_self_attention_layer_v2.1} parent=5 // pred_check_branch
        %1536 = sbr.rel (%p1534) target = $region68
      $region67: #{shuffle_self_attention_layer_v2.1} parent=5 // pred_region
        %s1537 = ssub.s32 %s20, 2
        // Predicated region
        $region69: #{shuffle_self_attention_layer_v2.1} parent=67 // pred_check
          %p1538 = pneg %p248
        $region70: #{shuffle_self_attention_layer_v2.1} parent=67 // pred_check_branch
          %1540 = sbr.rel (%p1538) target = $region72
        $region71: #{shuffle_self_attention_layer_v2.1} parent=67 // pred_region
          %p1541 = scmp.lt.s32.totalorder %s26, 1
          %s1542 = scalar_select %p1541, %s26, 1
          %s1543 = smul.addr %s1542, 4
          %s1544 = scalar_lea.vmem %s9, %s1543
        $region72: #{shuffle_self_attention_layer_v2.1} parent=67 // pred_fallthru
          _
        // Predicated region
        $region73: #{shuffle_self_attention_layer_v2.1} parent=67 // pred_check
          %p1545 = pneg %p274
        $region74: #{shuffle_self_attention_layer_v2.1} parent=67 // pred_check_branch
          %1547 = sbr.rel (%p1545) target = $region76
        $region75: #{shuffle_self_attention_layer_v2.1} parent=67 // pred_region
          %s1548 = sand.u32 %s259, 1
          %s1549 = scalar_lea.sflag [#allocation3], %s1548
          %s1550 = sand.u32 %s259, 1
          %s1551 = smul.addr %s1550, 32
          %s1552 = scalar_lea.vmem [#allocation2], %s1551
          %1553 = dma.done %s1549, 512
        $region76: #{shuffle_self_attention_layer_v2.1} parent=67 // pred_fallthru
          _
      $region68: #{shuffle_self_attention_layer_v2.1} parent=5 // pred_fallthru
        _
    $region6: #{shuffle_self_attention_layer_v2.1} parent=1 // loop_footer
      %s24 = sadd.s32 1, %s20
    $region7: #{shuffle_self_attention_layer_v2.1} parent=1 // loop_footer_branch
      %19 = sbr.rel target = $region3
    $region8: #{shuffle_self_attention_layer_v2.1} parent=1 // loop_exit
      _
    %1554 = vsyncpa [#allocation3], 1
    %s1555 = scalar_lea.sflag [#allocation3], 1
    %1556 = vsyncpa %s1555, 1

</llo_original>
